<compile_context>
chip_gen: v7x
topology: tpu7x:2x2x1
jax: 0.10.0
libtpu: 0.0.40
codegen_flags: <defaults>
</compile_context>

<pallas_src>
import functools

import jax
import jax.numpy as jnp
from jax import lax
from jax.experimental import pallas as pl
from jax.experimental.pallas import tpu as pltpu

BN_EPS = 1e-5
LANE = 128
MXU_DTYPE = jnp.bfloat16            # MXU input precision (f32 accumulation)
CONV_STORE_DTYPE = jnp.bfloat16     # HBM dtype of the conv intermediate (2-pass path)
VMEM_LIMIT = 32 * 1024 * 1024       # safe on v5e/v6e (128 MiB) and v7x (64 MiB)
FUSED_VMEM_BUDGET = 8 * 1024 * 1024
FUSED_MAX_BATCH = 8


def _round_up(x, m):
    return ((x + m - 1) // m) * m


def _pick_lane_tile(total, target=2048, align=LANE):
    """Largest `align`-multiple divisor of `total` <= target (prefer >=2 tiles).

    Falls back to the full extent (always a legal lane-dense block via the
    "equal to the full array dim" rule) instead of degenerating to tiny tiles.
    """
    limit = min(target, total if total <= align else total // 2)
    best = None
    t = align
    while t <= limit:
        if total % t == 0:
            best = t
        t += align
    return best if best is not None else total


# ----------------------------- host-side layout glue -----------------------------

def _im2col_channel_major(x_nchw, KH, KW, stride, padding, mxu_dtype):
    """(N, Cin, H, W) -> (N, KH*KW*Cin, Hout*Wout) with K order (ky, kx, ci)."""
    N, Cin, H, W = x_nchw.shape
    Hout = (H + 2 * padding - KH) // stride + 1
    Wout = (W + 2 * padding - KW) // stride + 1
    xp = jnp.pad(x_nchw, ((0, 0), (0, 0), (padding, padding), (padding, padding)))
    taps = []
    for ky in range(KH):
        for kx in range(KW):
            taps.append(xp[:, :, ky:ky + stride * (Hout - 1) + 1:stride,
                               kx:kx + stride * (Wout - 1) + 1:stride])
    xcol = jnp.concatenate(taps, axis=1)                     # (N, 9*Cin, Hout, Wout)
    xcol = xcol.reshape(N, KH * KW * Cin, Hout * Wout).astype(mxu_dtype)
    return xcol, Hout, Wout


def _prep_weight(weight_oihw, Coutp, K9p, mxu_dtype):
    """(Cout, Cin, KH, KW) -> (Coutp, K9p) with matching (ky, kx, ci) K order."""
    Cout, Cin, KH, KW = weight_oihw.shape
    K9 = KH * KW * Cin
    w = jnp.transpose(weight_oihw, (0, 2, 3, 1)).reshape(Cout, K9)
    w = jnp.pad(w, ((0, Coutp - Cout), (0, K9p - K9)))
    return w.astype(mxu_dtype)


# --------------------------------- kernels ---------------------------------------

def _make_fused_kernel(N, HWo, eps):
    """Single-call path: conv + centered BN stats + affine + ReLU, all in VMEM."""

    def kernel(xcol_ref, w_ref, gamma_ref, beta_ref, o_ref, conv_ref):
        # xcol_ref: (N, K9p, HWo) bf16   w_ref: (Coutp, K9p) bf16
        # gamma/beta: (Coutp, 1) f32     o_ref / conv_ref: (N, Coutp, HWo) f32
        w = w_ref[...]
        for n in range(N):                      # static unroll (small-N path only)
            conv_ref[n, :, :] = jnp.dot(w, xcol_ref[n, :, :],
                                        preferred_element_type=jnp.float32)

        inv_cnt = 1.0 / float(N * HWo)
        # Two-sweep (centered) statistics: everything is resident in VMEM, so
        # the numerically stable form costs one extra cheap sweep.
        csum = jnp.zeros(gamma_ref.shape, jnp.float32)        # (Coutp, 1)
        for n in range(N):
            csum = csum + jnp.sum(conv_ref[n, :, :], axis=1, keepdims=True)
        mean = csum * inv_cnt
        cvar = jnp.zeros(gamma_ref.shape, jnp.float32)
        for n in range(N):
            c = conv_ref[n, :, :] - mean
            cvar = cvar + jnp.sum(c * c, axis=1, keepdims=True)
        var = cvar * inv_cnt

        inv_std = lax.rsqrt(var + eps)
        scale = gamma_ref[...] * inv_std                      # (Coutp, 1)
        shift = beta_ref[...] - mean * scale
        for n in range(N):
            o_ref[n, :, :] = jnp.maximum(conv_ref[n, :, :] * scale + shift, 0.0)

    return kernel


def _make_conv_stats_kernel(thw):
    """Pass 1: one K=9*Cin matmul per (image, spatial-tile) step + partial stats."""
    inv_cnt = 1.0 / float(thw)

    def kernel(xcol_ref, w_ref, conv_ref, stats_ref):
        # xcol_ref: (1, K9p, thw) bf16      w_ref: (Coutp, K9p) bf16
        # conv_ref: (1, Coutp, thw) CONV_STORE_DTYPE
        # stats_ref: (1, 1, Coutp, 8) f32 -- lane 0: sum, lane 1: centered sumsq
        conv = jnp.dot(w_ref[...], xcol_ref[0, :, :],
                       preferred_element_type=jnp.float32)    # (Coutp, thw) f32
        conv_ref[0, :, :] = conv.astype(conv_ref.dtype)

        s = jnp.sum(conv, axis=1, keepdims=True)              # (Coutp, 1)
        centered = conv - s * inv_cnt                         # tile-centered
        q = jnp.sum(centered * centered, axis=1, keepdims=True)
        lane = lax.broadcasted_iota(jnp.int32, (conv.shape[0], 8), 1)
        stats_ref[0, 0, :, :] = jnp.where(lane == 0, s, jnp.where(lane == 1, q, 0.0))

    return kernel


def _bn_relu_kernel(conv_ref, scale_ref, shift_ref, o_ref):
    """Pass 2: y = max(conv * scale + shift, 0) on lane-dense (Coutp, tile) blocks."""
    x = conv_ref[0, :, :].astype(jnp.float32)
    o_ref[0, :, :] = jnp.maximum(x * scale_ref[...] + shift_ref[...], 0.0)


# ----------------------------- two-pass (large) path -----------------------------

def _two_pass_forward(xcol, w_t, gamma_col, beta_col, N, Coutp, K9p, HWo, eps):
    conv_isize = jnp.dtype(CONV_STORE_DTYPE).itemsize

    # -------- pass 1: conv + per-step partial stats (both grid axes parallel) ------
    thw1 = _pick_lane_tile(HWo, target=2048)
    t1 = HWo // thw1
    flops1 = 2 * N * HWo * K9p * Coutp + 4 * N * HWo * Coutp
    bytes1 = (xcol.size * 2 + w_t.size * 2 + N * Coutp * HWo * conv_isize
              + N * t1 * Coutp * 8 * 4)
    conv, stats = pl.pallas_call(
        _make_conv_stats_kernel(thw1),
        out_shape=(
            jax.ShapeDtypeStruct((N, Coutp, HWo), CONV_STORE_DTYPE),
            jax.ShapeDtypeStruct((N, t1, Coutp, 8), jnp.float32),
        ),
        grid_spec=pltpu.PrefetchScalarGridSpec(
            num_scalar_prefetch=0,
            grid=(N, t1),
            in_specs=[
                pl.BlockSpec((1, K9p, thw1), lambda n, t: (n, 0, t)),
                # TODO(synk): single-buffer this grid-invariant weight block.
                pl.BlockSpec((Coutp, K9p), lambda n, t: (0, 0)),
            ],
            out_specs=(
                pl.BlockSpec((1, Coutp, thw1), lambda n, t: (n, 0, t)),
                pl.BlockSpec((1, 1, Coutp, 8), lambda n, t: (n, t, 0, 0)),
            ),
        ),
        compiler_params=pltpu.CompilerParams(
            # every output block is per-step -> truly parallel (v7x 2-TC sharding)
            dimension_semantics=("parallel", "parallel"),
            vmem_limit_bytes=VMEM_LIMIT,
        ),
        cost_estimate=pl.CostEstimate(flops=flops1, transcendentals=0,
                                      bytes_accessed=bytes1),
    )(xcol, w_t)

    # -------- BN finalize (tiny O(Coutp) XLA glue, Chan parallel-variance) ---------
    cnt_tile = jnp.float32(thw1)
    total = jnp.float32(N * HWo)
    sums = stats[..., 0]                                      # (N, t1, Coutp)
    csq = stats[..., 1]
    mean = jnp.sum(sums, axis=(0, 1)) / total                 # (Coutp,)
    tile_mean = sums / cnt_tile
    var = (jnp.sum(csq, axis=(0, 1))
           + cnt_tile * jnp.sum((tile_mean - mean) ** 2, axis=(0, 1))) / total
    inv_std = lax.rsqrt(var + eps)
    scale = gamma_col[:, 0] * inv_std
    shift = beta_col[:, 0] - mean * scale
    scale_col = scale.reshape(Coutp, 1)
    shift_col = shift.reshape(Coutp, 1)

    # --------------------------- pass 2: affine + ReLU -----------------------------
    thw2 = _pick_lane_tile(HWo, target=2048)
    t2 = HWo // thw2
    flops2 = 3 * N * HWo * Coutp
    bytes2 = N * Coutp * HWo * (conv_isize + 4) + 2 * Coutp * 4
    y = pl.pallas_call(
        _bn_relu_kernel,
        out_shape=jax.ShapeDtypeStruct((N, Coutp, HWo), jnp.float32),
        grid_spec=pltpu.PrefetchScalarGridSpec(
            num_scalar_prefetch=0,
            grid=(N, t2),
            in_specs=[
                pl.BlockSpec((1, Coutp, thw2), lambda n, t: (n, 0, t)),
                pl.BlockSpec((Coutp, 1), lambda n, t: (0, 0)),
                pl.BlockSpec((Coutp, 1), lambda n, t: (0, 0)),
            ],
            out_specs=pl.BlockSpec((1, Coutp, thw2), lambda n, t: (n, 0, t)),
        ),
        compiler_params=pltpu.CompilerParams(
            dimension_semantics=("parallel", "parallel"),
            vmem_limit_bytes=VMEM_LIMIT,
        ),
        cost_estimate=pl.CostEstimate(flops=flops2, transcendentals=0,
                                      bytes_accessed=bytes2),
    )(conv, scale_col, shift_col)
    return y


# --------------------------------- public wrapper --------------------------------

def conv_block_forward(x_nchw, weight_oihw, gamma, beta, *, stride=1, padding=1,
                       eps=BN_EPS, force_path=None):
    """ConvBlock forward: Conv2d(bias=False) -> BatchNorm2d(batch stats) -> ReLU.

    x_nchw: (N, Cin, H, W); weight: (Cout, Cin, KH, KW). Returns NCHW f32.
    """
    N, Cin, H, W = x_nchw.shape
    Cout, Cin_w, KH, KW = weight_oihw.shape
    assert Cin_w == Cin

    K9 = KH * KW * Cin
    K9p = _round_up(K9, 16)           # bf16 sublane packing
    Coutp = _round_up(Cout, LANE)

    xcol, Hout, Wout = _im2col_channel_major(x_nchw, KH, KW, stride, padding, MXU_DTYPE)
    HWo = Hout * Wout
    xcol = jnp.pad(xcol, ((0, 0), (0, K9p - K9), (0, 0)))     # zero taps contribute 0
    w_t = _prep_weight(weight_oihw, Coutp, K9p, MXU_DTYPE)
    gamma_col = jnp.pad(gamma.astype(jnp.float32), (0, Coutp - Cout)).reshape(Coutp, 1)
    beta_col = jnp.pad(beta.astype(jnp.float32), (0, Coutp - Cout)).reshape(Coutp, 1)

    fused_bytes = 2 * N * Coutp * HWo * 4 + xcol.size * 2 + w_t.size * 2
    use_fused = (force_path == "fused") or (
        force_path is None and N <= FUSED_MAX_BATCH and fused_bytes <= FUSED_VMEM_BUDGET)

    if use_fused:
        y = pl.pallas_call(
            _make_fused_kernel(N, HWo, eps),
            out_shape=jax.ShapeDtypeStruct((N, Coutp, HWo), jnp.float32),
            grid_spec=pltpu.PrefetchScalarGridSpec(
                num_scalar_prefetch=0,
                grid=(1,),
                in_specs=[
                    pl.BlockSpec((N, K9p, HWo), lambda i: (0, 0, 0)),
                    pl.BlockSpec((Coutp, K9p), lambda i: (0, 0)),
                    pl.BlockSpec((Coutp, 1), lambda i: (0, 0)),
                    pl.BlockSpec((Coutp, 1), lambda i: (0, 0)),
                ],
                out_specs=pl.BlockSpec((N, Coutp, HWo), lambda i: (0, 0, 0)),
                scratch_shapes=[pltpu.VMEM((N, Coutp, HWo), jnp.float32)],
            ),
            compiler_params=pltpu.CompilerParams(vmem_limit_bytes=VMEM_LIMIT),
            cost_estimate=pl.CostEstimate(
                flops=2 * N * HWo * K9p * Coutp + 8 * N * HWo * Coutp,
                transcendentals=Coutp,
                bytes_accessed=xcol.size * 2 + w_t.size * 2 + N * Coutp * HWo * 4),
        )(xcol, w_t, gamma_col, beta_col)
    else:
        y = _two_pass_forward(xcol, w_t, gamma_col, beta_col, N, Coutp, K9p, HWo, eps)

    # channel-major output is already NCHW: slice padded channels, reshape (free).
    return y[:, :Cout, :].reshape(N, Cout, Hout, Wout)


# --------------------------------- reference --------------------------------------

def _reference(x_nchw, weight_oihw, gamma, beta, *, stride=1, padding=1,
               conv_store_dtype=jnp.float32):
    """Plain-JAX reference, same MXU input precision (bf16 in, f32 accumulate)."""
    conv = lax.conv_general_dilated(
        x_nchw.astype(MXU_DTYPE), weight_oihw.astype(MXU_DTYPE),
        window_strides=(stride, stride),
        padding=((padding, padding), (padding, padding)),
        dimension_numbers=("NCHW", "OIHW", "NCHW"),
        preferred_element_type=jnp.float32)
    mean = jnp.mean(conv, axis=(0, 2, 3), keepdims=True)
    var = jnp.mean((conv - mean) ** 2, axis=(0, 2, 3), keepdims=True)
    conv_q = conv.astype(conv_store_dtype).astype(jnp.float32)  # mirror intermediate dtype
    y = (conv_q - mean) * lax.rsqrt(var + BN_EPS)
    y = y * gamma.reshape(1, -1, 1, 1) + beta.reshape(1, -1, 1, 1)
    return jnp.maximum(y, 0.0)


if __name__ == "__main__":
    key = jax.random.PRNGKey(0)
    ks = jax.random.split(key, 8)

    # ---- Test 1: module shapes (N=2, Cin=4, Cout=8, 16x16) -> fused single-call path
    N, Cin, Cout, H, W = 2, 4, 8, 16, 16
    x = jax.random.normal(ks[0], (N, Cin, H, W), dtype=jnp.float32)
    wgt = jax.random.normal(ks[1], (Cout, Cin, 3, 3), dtype=jnp.float32) * 0.1
    gamma = 1.0 + 0.1 * jax.random.normal(ks[2], (Cout,), dtype=jnp.float32)
    beta = 0.1 * jax.random.normal(ks[3], (Cout,), dtype=jnp.float32)

    out = jax.block_until_ready(jax.jit(conv_block_forward)(x, wgt, gamma, beta))
    ref = jax.block_until_ready(_reference(x, wgt, gamma, beta))
    assert out.shape == (N, Cout, H, W), out.shape
    err_fused = float(jnp.max(jnp.abs(out - ref)))
    assert err_fused < 2e-3, f"fused path max err {err_fused}"

    # ---- Test 2: force the tiled two-pass path (bf16 intermediate), still small
    N2, Cin2, Cout2, H2, W2 = 2, 8, 16, 32, 32
    x2 = jax.random.normal(ks[4], (N2, Cin2, H2, W2), dtype=jnp.float32)
    wgt2 = jax.random.normal(ks[5], (Cout2, Cin2, 3, 3), dtype=jnp.float32) * 0.1
    gamma2 = 1.0 + 0.1 * jax.random.normal(ks[6], (Cout2,), dtype=jnp.float32)
    beta2 = 0.1 * jax.random.normal(ks[7], (Cout2,), dtype=jnp.float32)

    fwd2 = jax.jit(functools.partial(conv_block_forward, force_path="two_pass"))
    out2 = jax.block_until_ready(fwd2(x2, wgt2, gamma2, beta2))
    ref2 = jax.block_until_ready(
        _reference(x2, wgt2, gamma2, beta2, conv_store_dtype=CONV_STORE_DTYPE))
    assert out2.shape == (N2, Cout2, H2, W2), out2.shape
    err_two = float(jnp.max(jnp.abs(out2 - ref2)))
    assert err_two < 2e-2, f"two-pass path max err {err_two}"

    print("KERNEL_OK")
</pallas_src>

<mosaic_0001>
module attributes {stable_mosaic.version = 11 : i64} {
  func.func @kernel(%arg0: i32, %arg1: memref<2x48x256xbf16, #tpu.memory_space<vmem>>, %arg2: memref<128x48xbf16, #tpu.memory_space<vmem>>, %arg3: memref<128x1xf32, #tpu.memory_space<vmem>>, %arg4: memref<128x1xf32, #tpu.memory_space<vmem>>, %arg5: memref<2x128x256xf32, #tpu.memory_space<vmem>>, %arg6: memref<2x128x256xf32, #tpu.memory_space<vmem>>) attributes {dimension_semantics = [#tpu.dimension_semantics<arbitrary>], iteration_bounds = array<i64: 1>, scalar_prefetch = 0 : i64, scratch_operands = 1 : i64, tpu.core_type = #tpu.core_type<tc>, window_params = [{pipeline_mode = #tpu.pipeline_mode<synchronous>, transform_indices = @transform_0, window_bounds = array<i64: 2, 48, 256>}, {pipeline_mode = #tpu.pipeline_mode<synchronous>, transform_indices = @transform_1, window_bounds = array<i64: 128, 48>}, {pipeline_mode = #tpu.pipeline_mode<synchronous>, transform_indices = @transform_2, window_bounds = array<i64: 128, 1>}, {pipeline_mode = #tpu.pipeline_mode<synchronous>, transform_indices = @transform_3, window_bounds = array<i64: 128, 1>}, {pipeline_mode = #tpu.pipeline_mode<synchronous>, transform_indices = @transform_4, window_bounds = array<i64: 2, 128, 256>}]} {
    %c0 = arith.constant 0 : index
    %c0_0 = arith.constant 0 : index
    %0 = vector.load %arg2[%c0, %c0_0] : memref<128x48xbf16, #tpu.memory_space<vmem>>, vector<128x48xbf16>
    %c0_1 = arith.constant 0 : index
    %c0_2 = arith.constant 0 : index
    %c0_3 = arith.constant 0 : index
    %1 = vector.load %arg1[%c0_1, %c0_2, %c0_3] : memref<2x48x256xbf16, #tpu.memory_space<vmem>>, vector<1x48x256xbf16>
    %2 = vector.shape_cast %1 : vector<1x48x256xbf16> to vector<48x256xbf16>
    %cst = arith.constant dense<0.000000e+00> : vector<128x256xf32>
    %3 = tpu.matmul %0, %2, %cst {dimension_numbers = #tpu.dot_dimension_numbers<[1], [0], [0], [1], [0, 0, 1, 1], [], []>} : vector<128x48xbf16>, vector<48x256xbf16>, vector<128x256xf32> -> vector<128x256xf32>
    %c0_4 = arith.constant 0 : index
    %c0_5 = arith.constant 0 : index
    %c0_6 = arith.constant 0 : index
    %4 = vector.load %arg6[%c0_4, %c0_5, %c0_6] : memref<2x128x256xf32, #tpu.memory_space<vmem>>, vector<1x128x256xf32>
    %5 = vector.shape_cast %4 : vector<1x128x256xf32> to vector<128x256xf32>
    %6 = vector.shape_cast %3 : vector<128x256xf32> to vector<1x128x256xf32>
    tpu.vector_store %arg6[%c0_4, %c0_5, %c0_6], %6 {strides = array<i32>} : memref<2x128x256xf32, #tpu.memory_space<vmem>>, vector<1x128x256xf32>,
    %c1 = arith.constant 1 : index
    %c0_7 = arith.constant 0 : index
    %c0_8 = arith.constant 0 : index
    %7 = vector.load %arg1[%c1, %c0_7, %c0_8] : memref<2x48x256xbf16, #tpu.memory_space<vmem>>, vector<1x48x256xbf16>
    %8 = vector.shape_cast %7 : vector<1x48x256xbf16> to vector<48x256xbf16>
    %cst_9 = arith.constant dense<0.000000e+00> : vector<128x256xf32>
    %9 = tpu.matmul %0, %8, %cst_9 {dimension_numbers = #tpu.dot_dimension_numbers<[1], [0], [0], [1], [0, 0, 1, 1], [], []>} : vector<128x48xbf16>, vector<48x256xbf16>, vector<128x256xf32> -> vector<128x256xf32>
    %c1_10 = arith.constant 1 : index
    %c0_11 = arith.constant 0 : index
    %c0_12 = arith.constant 0 : index
    %10 = vector.load %arg6[%c1_10, %c0_11, %c0_12] : memref<2x128x256xf32, #tpu.memory_space<vmem>>, vector<1x128x256xf32>
    %11 = vector.shape_cast %10 : vector<1x128x256xf32> to vector<128x256xf32>
    %12 = vector.shape_cast %9 : vector<128x256xf32> to vector<1x128x256xf32>
    tpu.vector_store %arg6[%c1_10, %c0_11, %c0_12], %12 {strides = array<i32>} : memref<2x128x256xf32, #tpu.memory_space<vmem>>, vector<1x128x256xf32>,
    %cst_13 = arith.constant 0.000000e+00 : f32
    %13 = vector.broadcast %cst_13 : f32 to vector<128x1xf32>
    %c0_14 = arith.constant 0 : index
    %c0_15 = arith.constant 0 : index
    %c0_16 = arith.constant 0 : index
    %14 = vector.load %arg6[%c0_14, %c0_15, %c0_16] : memref<2x128x256xf32, #tpu.memory_space<vmem>>, vector<1x128x256xf32>
    %15 = vector.shape_cast %14 : vector<1x128x256xf32> to vector<128x256xf32>
    %cst_17 = arith.constant dense<0.000000e+00> : vector<128xf32>
    %16 = vector.multi_reduction <add>, %15, %cst_17 [1] : vector<128x256xf32> to vector<128xf32>
    %17 = vector.shape_cast %16 : vector<128xf32> to vector<128x1xf32>
    %18 = arith.addf %13, %17 : vector<128x1xf32>
    %c1_18 = arith.constant 1 : index
    %c0_19 = arith.constant 0 : index
    %c0_20 = arith.constant 0 : index
    %19 = vector.load %arg6[%c1_18, %c0_19, %c0_20] : memref<2x128x256xf32, #tpu.memory_space<vmem>>, vector<1x128x256xf32>
    %20 = vector.shape_cast %19 : vector<1x128x256xf32> to vector<128x256xf32>
    %cst_21 = arith.constant dense<0.000000e+00> : vector<128xf32>
    %21 = vector.multi_reduction <add>, %20, %cst_21 [1] : vector<128x256xf32> to vector<128xf32>
    %22 = vector.shape_cast %21 : vector<128xf32> to vector<128x1xf32>
    %23 = arith.addf %18, %22 : vector<128x1xf32>
    %cst_22 = arith.constant 0.001953125 : f32
    %24 = vector.broadcast %cst_22 : f32 to vector<128x1xf32>
    %25 = arith.mulf %23, %24 : vector<128x1xf32>
    %cst_23 = arith.constant 0.000000e+00 : f32
    %26 = vector.broadcast %cst_23 : f32 to vector<128x1xf32>
    %c0_24 = arith.constant 0 : index
    %c0_25 = arith.constant 0 : index
    %c0_26 = arith.constant 0 : index
    %27 = vector.load %arg6[%c0_24, %c0_25, %c0_26] : memref<2x128x256xf32, #tpu.memory_space<vmem>>, vector<1x128x256xf32>
    %28 = vector.shape_cast %27 : vector<1x128x256xf32> to vector<128x256xf32>
    %29 = vector.broadcast %25 : vector<128x1xf32> to vector<128x256xf32>
    %30 = arith.subf %28, %29 : vector<128x256xf32>
    %31 = arith.mulf %30, %30 : vector<128x256xf32>
    %cst_27 = arith.constant dense<0.000000e+00> : vector<128xf32>
    %32 = vector.multi_reduction <add>, %31, %cst_27 [1] : vector<128x256xf32> to vector<128xf32>
    %33 = vector.shape_cast %32 : vector<128xf32> to vector<128x1xf32>
    %34 = arith.addf %26, %33 : vector<128x1xf32>
    %c1_28 = arith.constant 1 : index
    %c0_29 = arith.constant 0 : index
    %c0_30 = arith.constant 0 : index
    %35 = vector.load %arg6[%c1_28, %c0_29, %c0_30] : memref<2x128x256xf32, #tpu.memory_space<vmem>>, vector<1x128x256xf32>
    %36 = vector.shape_cast %35 : vector<1x128x256xf32> to vector<128x256xf32>
    %37 = vector.broadcast %25 : vector<128x1xf32> to vector<128x256xf32>
    %38 = arith.subf %36, %37 : vector<128x256xf32>
    %39 = arith.mulf %38, %38 : vector<128x256xf32>
    %cst_31 = arith.constant dense<0.000000e+00> : vector<128xf32>
    %40 = vector.multi_reduction <add>, %39, %cst_31 [1] : vector<128x256xf32> to vector<128xf32>
    %41 = vector.shape_cast %40 : vector<128xf32> to vector<128x1xf32>
    %42 = arith.addf %34, %41 : vector<128x1xf32>
    %cst_32 = arith.constant 0.001953125 : f32
    %43 = vector.broadcast %cst_32 : f32 to vector<128x1xf32>
    %44 = arith.mulf %42, %43 : vector<128x1xf32>
    %cst_33 = arith.constant 9.99999974E-6 : f32
    %45 = vector.broadcast %cst_33 : f32 to vector<128x1xf32>
    %46 = arith.addf %44, %45 : vector<128x1xf32>
    %47 = math.rsqrt %46 : vector<128x1xf32>
    %c0_34 = arith.constant 0 : index
    %c0_35 = arith.constant 0 : index
    %48 = vector.load %arg3[%c0_34, %c0_35] : memref<128x1xf32, #tpu.memory_space<vmem>>, vector<128x1xf32>
    %49 = arith.mulf %48, %47 : vector<128x1xf32>
    %c0_36 = arith.constant 0 : index
    %c0_37 = arith.constant 0 : index
    %50 = vector.load %arg4[%c0_36, %c0_37] : memref<128x1xf32, #tpu.memory_space<vmem>>, vector<128x1xf32>
    %51 = arith.mulf %25, %49 : vector<128x1xf32>
    %52 = arith.subf %50, %51 : vector<128x1xf32>
    %c0_38 = arith.constant 0 : index
    %c0_39 = arith.constant 0 : index
    %c0_40 = arith.constant 0 : index
    %53 = vector.load %arg6[%c0_38, %c0_39, %c0_40] : memref<2x128x256xf32, #tpu.memory_space<vmem>>, vector<1x128x256xf32>
    %54 = vector.shape_cast %53 : vector<1x128x256xf32> to vector<128x256xf32>
    %55 = vector.broadcast %49 : vector<128x1xf32> to vector<128x256xf32>
    %56 = arith.mulf %54, %55 : vector<128x256xf32>
    %57 = vector.broadcast %52 : vector<128x1xf32> to vector<128x256xf32>
    %58 = arith.addf %56, %57 : vector<128x256xf32>
    %cst_41 = arith.constant 0.000000e+00 : f32
    %59 = vector.broadcast %cst_41 : f32 to vector<128x256xf32>
    %60 = arith.maximumf %58, %59 : vector<128x256xf32>
    %c0_42 = arith.constant 0 : index
    %c0_43 = arith.constant 0 : index
    %c0_44 = arith.constant 0 : index
    %61 = vector.load %arg5[%c0_42, %c0_43, %c0_44] : memref<2x128x256xf32, #tpu.memory_space<vmem>>, vector<1x128x256xf32>
    %62 = vector.shape_cast %61 : vector<1x128x256xf32> to vector<128x256xf32>
    %63 = vector.shape_cast %60 : vector<128x256xf32> to vector<1x128x256xf32>
    tpu.vector_store %arg5[%c0_42, %c0_43, %c0_44], %63 {strides = array<i32>} : memref<2x128x256xf32, #tpu.memory_space<vmem>>, vector<1x128x256xf32>,
    %c1_45 = arith.constant 1 : index
    %c0_46 = arith.constant 0 : index
    %c0_47 = arith.constant 0 : index
    %64 = vector.load %arg6[%c1_45, %c0_46, %c0_47] : memref<2x128x256xf32, #tpu.memory_space<vmem>>, vector<1x128x256xf32>
    %65 = vector.shape_cast %64 : vector<1x128x256xf32> to vector<128x256xf32>
    %66 = vector.broadcast %49 : vector<128x1xf32> to vector<128x256xf32>
    %67 = arith.mulf %65, %66 : vector<128x256xf32>
    %68 = vector.broadcast %52 : vector<128x1xf32> to vector<128x256xf32>
    %69 = arith.addf %67, %68 : vector<128x256xf32>
    %cst_48 = arith.constant 0.000000e+00 : f32
    %70 = vector.broadcast %cst_48 : f32 to vector<128x256xf32>
    %71 = arith.maximumf %69, %70 : vector<128x256xf32>
    %c1_49 = arith.constant 1 : index
    %c0_50 = arith.constant 0 : index
    %c0_51 = arith.constant 0 : index
    %72 = vector.load %arg5[%c1_49, %c0_50, %c0_51] : memref<2x128x256xf32, #tpu.memory_space<vmem>>, vector<1x128x256xf32>
    %73 = vector.shape_cast %72 : vector<1x128x256xf32> to vector<128x256xf32>
    %74 = vector.shape_cast %71 : vector<128x256xf32> to vector<1x128x256xf32>
    tpu.vector_store %arg5[%c1_49, %c0_50, %c0_51], %74 {strides = array<i32>} : memref<2x128x256xf32, #tpu.memory_space<vmem>>, vector<1x128x256xf32>,
    return
  }
  func.func @transform_0(%arg0: i32) -> (i32, i32, i32) {
    %c0_i32 = arith.constant 0 : i32
    %c0_i32_0 = arith.constant 0 : i32
    %c0_i32_1 = arith.constant 0 : i32
    %c0_i32_2 = arith.constant 0 : i32
    return %c0_i32, %c0_i32_0, %c0_i32_1 : i32, i32, i32
  }
  func.func @transform_1(%arg0: i32) -> (i32, i32) {
    %c0_i32 = arith.constant 0 : i32
    %c0_i32_0 = arith.constant 0 : i32
    %c0_i32_1 = arith.constant 0 : i32
    return %c0_i32, %c0_i32_0 : i32, i32
  }
  func.func @transform_2(%arg0: i32) -> (i32, i32) {
    %c0_i32 = arith.constant 0 : i32
    %c0_i32_0 = arith.constant 0 : i32
    %c0_i32_1 = arith.constant 0 : i32
    return %c0_i32, %c0_i32_0 : i32, i32
  }
  func.func @transform_3(%arg0: i32) -> (i32, i32) {
    %c0_i32 = arith.constant 0 : i32
    %c0_i32_0 = arith.constant 0 : i32
    %c0_i32_1 = arith.constant 0 : i32
    return %c0_i32, %c0_i32_0 : i32, i32
  }
  func.func @transform_4(%arg0: i32) -> (i32, i32, i32) {
    %c0_i32 = arith.constant 0 : i32
    %c0_i32_0 = arith.constant 0 : i32
    %c0_i32_1 = arith.constant 0 : i32
    %c0_i32_2 = arith.constant 0 : i32
    return %c0_i32, %c0_i32_0, %c0_i32_1 : i32, i32, i32
  }
}

</mosaic_0001>

<llo_original>
// kernel: conv_block_forward.1
$region0: #{conv_block_forward.1}
  #allocation0 [shape = 'u32[]', space=smem, size = 0x4, offset = 0x4, fixed_abs, tag = 'smem constant byte address 0x4 - core index']
  #allocation1 [shape = 'u32[144,128]{1,0:T(1,128)}', space=vmem, size = 0x12000, scoped, tag = 'internal scratch']
  #allocation2 [shape = 'f32[2,128,256]{2,1,0:T(8,128)}', space=vmem, size = 0x40000, scoped, tag = 'scratch operand']
  %s0 = inlined_call_operand.vmem [shape: bf16[2,48,256], index: 0, kind: input, shape index: {}]
  %s1 = inlined_call_operand.vmem [shape: bf16[128,48], index: 1, kind: input, shape index: {}]
  %s2 = inlined_call_operand.vmem [shape: f32[128,1], index: 2, kind: input, shape index: {}]
  %s3 = inlined_call_operand.vmem [shape: f32[128,1], index: 3, kind: input, shape index: {}]
  %s4 = inlined_call_operand.vmem [shape: f32[2,128,256], index: 4, kind: output, shape index: {}]
  %s5 = sld [smem:[#allocation0]]
  $region26: #{conv_block_forward.1} parent=0
    _
  %s7 = ssub.s32 1, %s5
  %s8 = scalar_select 0, %s7, %s5
  // Predicated region
  $region2: #{conv_block_forward.1} parent=0 // pred_check
    _
  $region3: #{conv_block_forward.1} parent=0 // pred_check_branch
    %10 = sbr.rel (0) target = $region5
  $region4: #{conv_block_forward.1} parent=0 // pred_region
    _
  $region5: #{conv_block_forward.1} parent=0 // pred_fallthru
    _
  // Predicated region
  $region6: #{conv_block_forward.1} parent=0 // pred_check
    _
  $region7: #{conv_block_forward.1} parent=0 // pred_check_branch
    %12 = sbr.rel (0) target = $region9
  $region8: #{conv_block_forward.1} parent=0 // pred_region
    _
  $region9: #{conv_block_forward.1} parent=0 // pred_fallthru
    _
  // Predicated region
  $region10: #{conv_block_forward.1} parent=0 // pred_check
    _
  $region11: #{conv_block_forward.1} parent=0 // pred_check_branch
    %14 = sbr.rel (0) target = $region13
  $region12: #{conv_block_forward.1} parent=0 // pred_region
    _
  $region13: #{conv_block_forward.1} parent=0 // pred_fallthru
    _
  // Predicated region
  $region14: #{conv_block_forward.1} parent=0 // pred_check
    _
  $region15: #{conv_block_forward.1} parent=0 // pred_check_branch
    %16 = sbr.rel (0) target = $region17
  $region16: #{conv_block_forward.1} parent=0 // pred_region
    _
  $region17: #{conv_block_forward.1} parent=0 // pred_fallthru
    _
  %v18 = vld [vmem:[%s1] sm:$0xf]
  %v19 = vld [vmem:[%s1 + $0x4] sm:$0xf]
  %v20 = vld [vmem:[%s1 + $0x8] sm:$0xf]
  %v21 = vld [vmem:[%s1 + $0xc] sm:$0xf]
  %v22 = vld [vmem:[%s1 + $0x10] sm:$0xf]
  %v23 = vld [vmem:[%s1 + $0x14] sm:$0xf]
  %v24 = vld [vmem:[%s1 + $0x18] sm:$0xf]
  %v25 = vld [vmem:[%s1 + $0x1c] sm:$0xf]
  %v26 = vld [vmem:[%s1 + $0x20] sm:$0xf]
  %v27 = vld [vmem:[%s1 + $0x24] sm:$0xf]
  %v28 = vld [vmem:[%s1 + $0x28] sm:$0xf]
  %v29 = vld [vmem:[%s1 + $0x2c] sm:$0xf]
  %v30 = vld [vmem:[%s1 + $0x30] sm:$0xf]
  %v31 = vld [vmem:[%s1 + $0x34] sm:$0xf]
  %v32 = vld [vmem:[%s1 + $0x38] sm:$0xf]
  %v33 = vld [vmem:[%s1 + $0x3c] sm:$0xf]
  %v34 = vld [vmem:[%s0] sm:$0xff]
  %v35 = vld [vmem:[%s0 + $0x8] sm:$0xff]
  %v36 = vld [vmem:[%s0 + $0x10] sm:$0xff]
  %v37 = vld [vmem:[%s0 + $0x18] sm:$0xff]
  %v38 = vld [vmem:[%s0 + $0x20] sm:$0xff]
  %v39 = vld [vmem:[%s0 + $0x28] sm:$0xff]
  %v56 = vunpack.c.l.b16 %v18
  %v57 = vunpack.c.l.b16 %v19
  %v58 = vunpack.c.l.b16 %v20
  %v59 = vunpack.c.l.b16 %v21
  %v60 = vunpack.c.l.b16 %v22
  %v61 = vunpack.c.l.b16 %v23
  %v62 = vunpack.c.l.b16 %v24
  %v63 = vunpack.c.l.b16 %v25
  %v64 = vunpack.c.l.b16 %v26
  %v65 = vunpack.c.l.b16 %v27
  %v66 = vunpack.c.l.b16 %v28
  %v67 = vunpack.c.l.b16 %v29
  %v68 = vunpack.c.l.b16 %v30
  %v69 = vunpack.c.l.b16 %v31
  %v70 = vunpack.c.l.b16 %v32
  %v71 = vunpack.c.l.b16 %v33
  %v72 = vpack.c.b16 %v57, %v56
  %v73 = vpack.c.b16 %v59, %v58
  %v74 = vpack.c.b16 %v61, %v60
  %v75 = vpack.c.b16 %v63, %v62
  %v76 = vpack.c.b16 %v65, %v64
  %v77 = vpack.c.b16 %v67, %v66
  %v78 = vpack.c.b16 %v69, %v68
  %v79 = vpack.c.b16 %v71, %v70
  %v86 = vunpack.c.l.b16 %v34
  %v87 = vunpack.c.h.b16 %v34
  %v88 = vunpack.c.l.b16 %v35
  %v89 = vunpack.c.h.b16 %v35
  %v90 = vunpack.c.l.b16 %v36
  %v91 = vunpack.c.h.b16 %v36
  %v92 = vunpack.c.l.b16 %v37
  %v93 = vunpack.c.h.b16 %v37
  %v94 = vunpack.c.l.b16 %v38
  %v95 = vunpack.c.h.b16 %v38
  %v96 = vunpack.c.l.b16 %v39
  %v97 = vunpack.c.h.b16 %v39
  %v98 = vpack.c.b16 %v88, %v86
  %v99 = vpack.c.b16 %v89, %v87
  %v100 = vpack.c.b16 %v92, %v90
  %v101 = vpack.c.b16 %v93, %v91
  %v102 = vpack.c.b16 %v96, %v94
  %v103 = vpack.c.b16 %v97, %v95
  %vm110 = vcmask 392192
  %v112 = vsel %vm110, %v72, 0
  %v115 = vsel %vm110, %v73, 0
  %v118 = vsel %vm110, %v74, 0
  %v121 = vsel %vm110, %v75, 0
  %v124 = vsel %vm110, %v76, 0
  %v127 = vsel %vm110, %v77, 0
  %v130 = vsel %vm110, %v78, 0
  %v133 = vsel %vm110, %v79, 0
  %135 = vmatprep.subr.bf16.mxu0 %v99
  %136 = vmatpush1.bf16.msra.mxu0 %v98
  %137 = vmatprep.subr.bf16.mxu0 %v101
  %138 = vmatpush1.bf16.msra.mxu0 %v100
  %139 = vmatprep.subr.bf16.mxu0 %v103
  %140 = vmatpush1.bf16.msra.mxu0 %v102
  %141 = vmatprep.subr.bf16.mxu0 0
  %142 = vmatpush1.bf16.msra.mxu0 0
  %143 = vmatprep.subr.bf16.mxu0 0
  %144 = vmatpush1.bf16.msra.mxu0 0
  %145 = vmatprep.subr.bf16.mxu0 0
  %146 = vmatpush1.bf16.msra.mxu0 0
  %147 = vmatprep.subr.bf16.mxu0 0
  %148 = vmatpush1.bf16.msra.mxu0 0
  %149 = vmatprep.subr.bf16.mxu0 0
  %150 = vmatpush1.bf16.msra.mxu0 0
  %151 = vmatprep.subr.bf16.mxu0 0
  %152 = vmatpush1.bf16.msra.mxu0 0
  %153 = vmatprep.subr.bf16.mxu0 0
  %154 = vmatpush1.bf16.msra.mxu0 0
  %155 = vmatprep.subr.bf16.mxu0 0
  %156 = vmatpush1.bf16.msra.mxu0 0
  %157 = vmatprep.subr.bf16.mxu0 0
  %158 = vmatpush1.bf16.msra.mxu0 0
  %159 = vmatprep.subr.bf16.mxu0 0
  %160 = vmatpush1.bf16.msra.mxu0 0
  %161 = vmatprep.subr.bf16.mxu0 0
  %162 = vmatpush1.bf16.msra.mxu0 0
  %163 = vmatprep.subr.bf16.mxu0 0
  %164 = vmatpush1.bf16.msra.mxu0 0
  %165 = vmatprep.subr.bf16.mxu0 0
  %166 = vmatpush1.bf16.msra.mxu0 0
  %167 = vmatprep.mubr.bf16.mxu0 0
  %168 = vmatmul.mubr.bf16.gmra.mrb[0].mxu0 %v112
  %v169 = vpop.f32.mrb[0].mxu0
  %v170 = vadd.f32 0.0, %v169
  %v171 = vpop.f32.mrb[0].mxu0
  %v172 = vadd.f32 0.0, %v171
  %v173 = vpop.f32.mrb[0].mxu0
  %v174 = vadd.f32 0.0, %v173
  %v175 = vpop.f32.mrb[0].mxu0
  %v176 = vadd.f32 0.0, %v175
  %177 = vmatprep.mubr.bf16.mxu0 0
  %178 = vmatmul.mubr.bf16.gmra.mrb[0].mxu0 %v115
  %v179 = vpop.f32.mrb[0].mxu0
  %v180 = vadd.f32 0.0, %v179
  %v181 = vpop.f32.mrb[0].mxu0
  %v182 = vadd.f32 0.0, %v181
  %v183 = vpop.f32.mrb[0].mxu0
  %v184 = vadd.f32 0.0, %v183
  %v185 = vpop.f32.mrb[0].mxu0
  %v186 = vadd.f32 0.0, %v185
  %187 = vmatprep.mubr.bf16.mxu0 0
  %188 = vmatmul.mubr.bf16.gmra.mrb[0].mxu0 %v118
  %v189 = vpop.f32.mrb[0].mxu0
  %v190 = vadd.f32 0.0, %v189
  %v191 = vpop.f32.mrb[0].mxu0
  %v192 = vadd.f32 0.0, %v191
  %v193 = vpop.f32.mrb[0].mxu0
  %v194 = vadd.f32 0.0, %v193
  %v195 = vpop.f32.mrb[0].mxu0
  %v196 = vadd.f32 0.0, %v195
  %197 = vmatprep.mubr.bf16.mxu0 0
  %198 = vmatmul.mubr.bf16.gmra.mrb[0].mxu0 %v121
  %v199 = vpop.f32.mrb[0].mxu0
  %v200 = vadd.f32 0.0, %v199
  %v201 = vpop.f32.mrb[0].mxu0
  %v202 = vadd.f32 0.0, %v201
  %v203 = vpop.f32.mrb[0].mxu0
  %v204 = vadd.f32 0.0, %v203
  %v205 = vpop.f32.mrb[0].mxu0
  %v206 = vadd.f32 0.0, %v205
  %207 = vmatprep.mubr.bf16.mxu0 0
  %208 = vmatmul.mubr.bf16.gmra.mrb[0].mxu0 %v124
  %v209 = vpop.f32.mrb[0].mxu0
  %v210 = vadd.f32 0.0, %v209
  %v211 = vpop.f32.mrb[0].mxu0
  %v212 = vadd.f32 0.0, %v211
  %v213 = vpop.f32.mrb[0].mxu0
  %v214 = vadd.f32 0.0, %v213
  %v215 = vpop.f32.mrb[0].mxu0
  %v216 = vadd.f32 0.0, %v215
  %217 = vmatprep.mubr.bf16.mxu0 0
  %218 = vmatmul.mubr.bf16.gmra.mrb[0].mxu0 %v127
  %v219 = vpop.f32.mrb[0].mxu0
  %v220 = vadd.f32 0.0, %v219
  %v221 = vpop.f32.mrb[0].mxu0
  %v222 = vadd.f32 0.0, %v221
  %v223 = vpop.f32.mrb[0].mxu0
  %v224 = vadd.f32 0.0, %v223
  %v225 = vpop.f32.mrb[0].mxu0
  %v226 = vadd.f32 0.0, %v225
  %227 = vmatprep.mubr.bf16.mxu0 0
  %228 = vmatmul.mubr.bf16.gmra.mrb[0].mxu0 %v130
  %v229 = vpop.f32.mrb[0].mxu0
  %v230 = vadd.f32 0.0, %v229
  %v231 = vpop.f32.mrb[0].mxu0
  %v232 = vadd.f32 0.0, %v231
  %v233 = vpop.f32.mrb[0].mxu0
  %v234 = vadd.f32 0.0, %v233
  %v235 = vpop.f32.mrb[0].mxu0
  %v236 = vadd.f32 0.0, %v235
  %237 = vmatprep.mubr.bf16.mxu0 0
  %238 = vmatmul.mubr.bf16.gmra.mrb[0].mxu0 %v133
  %v239 = vpop.f32.mrb[0].mxu0
  %v240 = vadd.f32 0.0, %v239
  %v241 = vpop.f32.mrb[0].mxu0
  %v242 = vadd.f32 0.0, %v241
  %v243 = vpop.f32.mrb[0].mxu0
  %v244 = vadd.f32 0.0, %v243
  %v245 = vpop.f32.mrb[0].mxu0
  %v246 = vadd.f32 0.0, %v245
  %247 = vdwg.mxu0
  %248 = vst [vmem:[#allocation2] sm:$0xff] %v170
  %249 = vst [vmem:[#allocation2 + $0x8] sm:$0xff] %v172
  %250 = vst [vmem:[#allocation2 + $0x10] sm:$0xff] %v174
  %251 = vst [vmem:[#allocation2 + $0x18] sm:$0xff] %v176
  %252 = vst [vmem:[#allocation2 + $0x20] sm:$0xff] %v180
  %253 = vst [vmem:[#allocation2 + $0x28] sm:$0xff] %v182
  %254 = vst [vmem:[#allocation2 + $0x30] sm:$0xff] %v184
  %255 = vst [vmem:[#allocation2 + $0x38] sm:$0xff] %v186
  %256 = vst [vmem:[#allocation2 + $0x40] sm:$0xff] %v190
  %257 = vst [vmem:[#allocation2 + $0x48] sm:$0xff] %v192
  %258 = vst [vmem:[#allocation2 + $0x50] sm:$0xff] %v194
  %259 = vst [vmem:[#allocation2 + $0x58] sm:$0xff] %v196
  %260 = vst [vmem:[#allocation2 + $0x60] sm:$0xff] %v200
  %261 = vst [vmem:[#allocation2 + $0x68] sm:$0xff] %v202
  %262 = vst [vmem:[#allocation2 + $0x70] sm:$0xff] %v204
  %263 = vst [vmem:[#allocation2 + $0x78] sm:$0xff] %v206
  %264 = vst [vmem:[#allocation2 + $0x80] sm:$0xff] %v210
  %265 = vst [vmem:[#allocation2 + $0x88] sm:$0xff] %v212
  %266 = vst [vmem:[#allocation2 + $0x90] sm:$0xff] %v214
  %267 = vst [vmem:[#allocation2 + $0x98] sm:$0xff] %v216
  %268 = vst [vmem:[#allocation2 + $0xa0] sm:$0xff] %v220
  %269 = vst [vmem:[#allocation2 + $0xa8] sm:$0xff] %v222
  %270 = vst [vmem:[#allocation2 + $0xb0] sm:$0xff] %v224
  %271 = vst [vmem:[#allocation2 + $0xb8] sm:$0xff] %v226
  %272 = vst [vmem:[#allocation2 + $0xc0] sm:$0xff] %v230
  %273 = vst [vmem:[#allocation2 + $0xc8] sm:$0xff] %v232
  %274 = vst [vmem:[#allocation2 + $0xd0] sm:$0xff] %v234
  %275 = vst [vmem:[#allocation2 + $0xd8] sm:$0xff] %v236
  %276 = vst [vmem:[#allocation2 + $0xe0] sm:$0xff] %v240
  %277 = vst [vmem:[#allocation2 + $0xe8] sm:$0xff] %v242
  %278 = vst [vmem:[#allocation2 + $0xf0] sm:$0xff] %v244
  %279 = vst [vmem:[#allocation2 + $0xf8] sm:$0xff] %v246
  %s280 = scalar_lea.vmem %s0, 48
  %v281 = vld [vmem:[%s280] sm:$0xff]
  %v282 = vld [vmem:[%s280 + $0x8] sm:$0xff]
  %v283 = vld [vmem:[%s280 + $0x10] sm:$0xff]
  %v284 = vld [vmem:[%s280 + $0x18] sm:$0xff]
  %v285 = vld [vmem:[%s280 + $0x20] sm:$0xff]
  %v286 = vld [vmem:[%s280 + $0x28] sm:$0xff]
  %v293 = vunpack.c.l.b16 %v281
  %v294 = vunpack.c.h.b16 %v281
  %v295 = vunpack.c.l.b16 %v282
  %v296 = vunpack.c.h.b16 %v282
  %v297 = vunpack.c.l.b16 %v283
  %v298 = vunpack.c.h.b16 %v283
  %v299 = vunpack.c.l.b16 %v284
  %v300 = vunpack.c.h.b16 %v284
  %v301 = vunpack.c.l.b16 %v285
  %v302 = vunpack.c.h.b16 %v285
  %v303 = vunpack.c.l.b16 %v286
  %v304 = vunpack.c.h.b16 %v286
  %v305 = vpack.c.b16 %v295, %v293
  %v306 = vpack.c.b16 %v296, %v294
  %v307 = vpack.c.b16 %v299, %v297
  %v308 = vpack.c.b16 %v300, %v298
  %v309 = vpack.c.b16 %v303, %v301
  %v310 = vpack.c.b16 %v304, %v302
  %317 = vmatprep.subr.bf16.mxu0 %v306
  %318 = vmatpush1.bf16.msra.mxu0 %v305
  %319 = vmatprep.subr.bf16.mxu0 %v308
  %320 = vmatpush1.bf16.msra.mxu0 %v307
  %321 = vmatprep.subr.bf16.mxu0 %v310
  %322 = vmatpush1.bf16.msra.mxu0 %v309
  %323 = vmatprep.subr.bf16.mxu0 0
  %324 = vmatpush1.bf16.msra.mxu0 0
  %325 = vmatprep.subr.bf16.mxu0 0
  %326 = vmatpush1.bf16.msra.mxu0 0
  %327 = vmatprep.subr.bf16.mxu0 0
  %328 = vmatpush1.bf16.msra.mxu0 0
  %329 = vmatprep.subr.bf16.mxu0 0
  %330 = vmatpush1.bf16.msra.mxu0 0
  %331 = vmatprep.subr.bf16.mxu0 0
  %332 = vmatpush1.bf16.msra.mxu0 0
  %333 = vmatprep.subr.bf16.mxu0 0
  %334 = vmatpush1.bf16.msra.mxu0 0
  %335 = vmatprep.subr.bf16.mxu0 0
  %336 = vmatpush1.bf16.msra.mxu0 0
  %337 = vmatprep.subr.bf16.mxu0 0
  %338 = vmatpush1.bf16.msra.mxu0 0
  %339 = vmatprep.subr.bf16.mxu0 0
  %340 = vmatpush1.bf16.msra.mxu0 0
  %341 = vmatprep.subr.bf16.mxu0 0
  %342 = vmatpush1.bf16.msra.mxu0 0
  %343 = vmatprep.subr.bf16.mxu0 0
  %344 = vmatpush1.bf16.msra.mxu0 0
  %345 = vmatprep.subr.bf16.mxu0 0
  %346 = vmatpush1.bf16.msra.mxu0 0
  %347 = vmatprep.subr.bf16.mxu0 0
  %348 = vmatpush1.bf16.msra.mxu0 0
  %349 = vmatprep.mubr.bf16.mxu0 0
  %350 = vmatmul.mubr.bf16.gmra.mrb[0].mxu0 %v112
  %v351 = vpop.f32.mrb[0].mxu0
  %v352 = vadd.f32 0.0, %v351
  %v353 = vpop.f32.mrb[0].mxu0
  %v354 = vadd.f32 0.0, %v353
  %v355 = vpop.f32.mrb[0].mxu0
  %v356 = vadd.f32 0.0, %v355
  %v357 = vpop.f32.mrb[0].mxu0
  %v358 = vadd.f32 0.0, %v357
  %359 = vmatprep.mubr.bf16.mxu0 0
  %360 = vmatmul.mubr.bf16.gmra.mrb[0].mxu0 %v115
  %v361 = vpop.f32.mrb[0].mxu0
  %v362 = vadd.f32 0.0, %v361
  %v363 = vpop.f32.mrb[0].mxu0
  %v364 = vadd.f32 0.0, %v363
  %v365 = vpop.f32.mrb[0].mxu0
  %v366 = vadd.f32 0.0, %v365
  %v367 = vpop.f32.mrb[0].mxu0
  %v368 = vadd.f32 0.0, %v367
  %369 = vmatprep.mubr.bf16.mxu0 0
  %370 = vmatmul.mubr.bf16.gmra.mrb[0].mxu0 %v118
  %v371 = vpop.f32.mrb[0].mxu0
  %v372 = vadd.f32 0.0, %v371
  %v373 = vpop.f32.mrb[0].mxu0
  %v374 = vadd.f32 0.0, %v373
  %v375 = vpop.f32.mrb[0].mxu0
  %v376 = vadd.f32 0.0, %v375
  %v377 = vpop.f32.mrb[0].mxu0
  %v378 = vadd.f32 0.0, %v377
  %379 = vmatprep.mubr.bf16.mxu0 0
  %380 = vmatmul.mubr.bf16.gmra.mrb[0].mxu0 %v121
  %v381 = vpop.f32.mrb[0].mxu0
  %v382 = vadd.f32 0.0, %v381
  %v383 = vpop.f32.mrb[0].mxu0
  %v384 = vadd.f32 0.0, %v383
  %v385 = vpop.f32.mrb[0].mxu0
  %v386 = vadd.f32 0.0, %v385
  %v387 = vpop.f32.mrb[0].mxu0
  %v388 = vadd.f32 0.0, %v387
  %389 = vmatprep.mubr.bf16.mxu0 0
  %390 = vmatmul.mubr.bf16.gmra.mrb[0].mxu0 %v124
  %v391 = vpop.f32.mrb[0].mxu0
  %v392 = vadd.f32 0.0, %v391
  %v393 = vpop.f32.mrb[0].mxu0
  %v394 = vadd.f32 0.0, %v393
  %v395 = vpop.f32.mrb[0].mxu0
  %v396 = vadd.f32 0.0, %v395
  %v397 = vpop.f32.mrb[0].mxu0
  %v398 = vadd.f32 0.0, %v397
  %399 = vmatprep.mubr.bf16.mxu0 0
  %400 = vmatmul.mubr.bf16.gmra.mrb[0].mxu0 %v127
  %v401 = vpop.f32.mrb[0].mxu0
  %v402 = vadd.f32 0.0, %v401
  %v403 = vpop.f32.mrb[0].mxu0
  %v404 = vadd.f32 0.0, %v403
  %v405 = vpop.f32.mrb[0].mxu0
  %v406 = vadd.f32 0.0, %v405
  %v407 = vpop.f32.mrb[0].mxu0
  %v408 = vadd.f32 0.0, %v407
  %409 = vmatprep.mubr.bf16.mxu0 0
  %410 = vmatmul.mubr.bf16.gmra.mrb[0].mxu0 %v130
  %v411 = vpop.f32.mrb[0].mxu0
  %v412 = vadd.f32 0.0, %v411
  %v413 = vpop.f32.mrb[0].mxu0
  %v414 = vadd.f32 0.0, %v413
  %v415 = vpop.f32.mrb[0].mxu0
  %v416 = vadd.f32 0.0, %v415
  %v417 = vpop.f32.mrb[0].mxu0
  %v418 = vadd.f32 0.0, %v417
  %419 = vmatprep.mubr.bf16.mxu0 0
  %420 = vmatmul.mubr.bf16.gmra.mrb[0].mxu0 %v133
  %v421 = vpop.f32.mrb[0].mxu0
  %v422 = vadd.f32 0.0, %v421
  %v423 = vpop.f32.mrb[0].mxu0
  %v424 = vadd.f32 0.0, %v423
  %v425 = vpop.f32.mrb[0].mxu0
  %v426 = vadd.f32 0.0, %v425
  %v427 = vpop.f32.mrb[0].mxu0
  %v428 = vadd.f32 0.0, %v427
  %429 = vdwg.mxu0
  %s430 = scalar_lea.vmem [#allocation2], 256
  %431 = vst [vmem:[%s430] sm:$0xff] %v352
  %432 = vst [vmem:[%s430 + $0x8] sm:$0xff] %v354
  %433 = vst [vmem:[%s430 + $0x10] sm:$0xff] %v356
  %434 = vst [vmem:[%s430 + $0x18] sm:$0xff] %v358
  %435 = vst [vmem:[%s430 + $0x20] sm:$0xff] %v362
  %436 = vst [vmem:[%s430 + $0x28] sm:$0xff] %v364
  %437 = vst [vmem:[%s430 + $0x30] sm:$0xff] %v366
  %438 = vst [vmem:[%s430 + $0x38] sm:$0xff] %v368
  %439 = vst [vmem:[%s430 + $0x40] sm:$0xff] %v372
  %440 = vst [vmem:[%s430 + $0x48] sm:$0xff] %v374
  %441 = vst [vmem:[%s430 + $0x50] sm:$0xff] %v376
  %442 = vst [vmem:[%s430 + $0x58] sm:$0xff] %v378
  %443 = vst [vmem:[%s430 + $0x60] sm:$0xff] %v382
  %444 = vst [vmem:[%s430 + $0x68] sm:$0xff] %v384
  %445 = vst [vmem:[%s430 + $0x70] sm:$0xff] %v386
  %446 = vst [vmem:[%s430 + $0x78] sm:$0xff] %v388
  %447 = vst [vmem:[%s430 + $0x80] sm:$0xff] %v392
  %448 = vst [vmem:[%s430 + $0x88] sm:$0xff] %v394
  %449 = vst [vmem:[%s430 + $0x90] sm:$0xff] %v396
  %450 = vst [vmem:[%s430 + $0x98] sm:$0xff] %v398
  %451 = vst [vmem:[%s430 + $0xa0] sm:$0xff] %v402
  %452 = vst [vmem:[%s430 + $0xa8] sm:$0xff] %v404
  %453 = vst [vmem:[%s430 + $0xb0] sm:$0xff] %v406
  %454 = vst [vmem:[%s430 + $0xb8] sm:$0xff] %v408
  %455 = vst [vmem:[%s430 + $0xc0] sm:$0xff] %v412
  %456 = vst [vmem:[%s430 + $0xc8] sm:$0xff] %v414
  %457 = vst [vmem:[%s430 + $0xd0] sm:$0xff] %v416
  %458 = vst [vmem:[%s430 + $0xd8] sm:$0xff] %v418
  %459 = vst [vmem:[%s430 + $0xe0] sm:$0xff] %v422
  %460 = vst [vmem:[%s430 + $0xe8] sm:$0xff] %v424
  %461 = vst [vmem:[%s430 + $0xf0] sm:$0xff] %v426
  %462 = vst [vmem:[%s430 + $0xf8] sm:$0xff] %v428
  %v463 = vld [vmem:[#allocation2] sm:$0xff]
  %v464 = vld [vmem:[#allocation2 + $0x8] sm:$0xff]
  %v465 = vld [vmem:[#allocation2 + $0x10] sm:$0xff]
  %v466 = vld [vmem:[#allocation2 + $0x18] sm:$0xff]
  %v467 = vld [vmem:[#allocation2 + $0x20] sm:$0xff]
  %v468 = vld [vmem:[#allocation2 + $0x28] sm:$0xff]
  %v469 = vld [vmem:[#allocation2 + $0x30] sm:$0xff]
  %v470 = vld [vmem:[#allocation2 + $0x38] sm:$0xff]
  %v471 = vld [vmem:[#allocation2 + $0x40] sm:$0xff]
  %v472 = vld [vmem:[#allocation2 + $0x48] sm:$0xff]
  %v473 = vld [vmem:[#allocation2 + $0x50] sm:$0xff]
  %v474 = vld [vmem:[#allocation2 + $0x58] sm:$0xff]
  %v475 = vld [vmem:[#allocation2 + $0x60] sm:$0xff]
  %v476 = vld [vmem:[#allocation2 + $0x68] sm:$0xff]
  %v477 = vld [vmem:[#allocation2 + $0x70] sm:$0xff]
  %v478 = vld [vmem:[#allocation2 + $0x78] sm:$0xff]
  %v479 = vld [vmem:[#allocation2 + $0x80] sm:$0xff]
  %v480 = vld [vmem:[#allocation2 + $0x88] sm:$0xff]
  %v481 = vld [vmem:[#allocation2 + $0x90] sm:$0xff]
  %v482 = vld [vmem:[#allocation2 + $0x98] sm:$0xff]
  %v483 = vld [vmem:[#allocation2 + $0xa0] sm:$0xff]
  %v484 = vld [vmem:[#allocation2 + $0xa8] sm:$0xff]
  %v485 = vld [vmem:[#allocation2 + $0xb0] sm:$0xff]
  %v486 = vld [vmem:[#allocation2 + $0xb8] sm:$0xff]
  %v487 = vld [vmem:[#allocation2 + $0xc0] sm:$0xff]
  %v488 = vld [vmem:[#allocation2 + $0xc8] sm:$0xff]
  %v489 = vld [vmem:[#allocation2 + $0xd0] sm:$0xff]
  %v490 = vld [vmem:[#allocation2 + $0xd8] sm:$0xff]
  %v491 = vld [vmem:[#allocation2 + $0xe0] sm:$0xff]
  %v492 = vld [vmem:[#allocation2 + $0xe8] sm:$0xff]
  %v493 = vld [vmem:[#allocation2 + $0xf0] sm:$0xff]
  %v494 = vld [vmem:[#allocation2 + $0xf8] sm:$0xff]
  %v495 = vadd.f32 %v463, %v464
  %496 = vadd.xlane.f32.xlu0 %v495
  %v497 = vpop.xlane.xlu0 %496
  %v498 = vadd.f32 %v465, %v466
  %499 = vadd.xlane.f32.xlu0 %v498
  %v500 = vpop.xlane.xlu0 %499
  %v501 = vadd.f32 %v467, %v468
  %502 = vadd.xlane.f32.xlu0 %v501
  %v503 = vpop.xlane.xlu0 %502
  %v504 = vadd.f32 %v469, %v470
  %505 = vadd.xlane.f32.xlu0 %v504
  %v506 = vpop.xlane.xlu0 %505
  %v507 = vadd.f32 %v471, %v472
  %508 = vadd.xlane.f32.xlu0 %v507
  %v509 = vpop.xlane.xlu0 %508
  %v510 = vadd.f32 %v473, %v474
  %511 = vadd.xlane.f32.xlu0 %v510
  %v512 = vpop.xlane.xlu0 %511
  %v513 = vadd.f32 %v475, %v476
  %514 = vadd.xlane.f32.xlu0 %v513
  %v515 = vpop.xlane.xlu0 %514
  %v516 = vadd.f32 %v477, %v478
  %517 = vadd.xlane.f32.xlu0 %v516
  %v518 = vpop.xlane.xlu0 %517
  %v519 = vadd.f32 %v479, %v480
  %520 = vadd.xlane.f32.xlu0 %v519
  %v521 = vpop.xlane.xlu0 %520
  %v522 = vadd.f32 %v481, %v482
  %523 = vadd.xlane.f32.xlu0 %v522
  %v524 = vpop.xlane.xlu0 %523
  %v525 = vadd.f32 %v483, %v484
  %526 = vadd.xlane.f32.xlu0 %v525
  %v527 = vpop.xlane.xlu0 %526
  %v528 = vadd.f32 %v485, %v486
  %529 = vadd.xlane.f32.xlu0 %v528
  %v530 = vpop.xlane.xlu0 %529
  %v531 = vadd.f32 %v487, %v488
  %532 = vadd.xlane.f32.xlu0 %v531
  %v533 = vpop.xlane.xlu0 %532
  %v534 = vadd.f32 %v489, %v490
  %535 = vadd.xlane.f32.xlu0 %v534
  %v536 = vpop.xlane.xlu0 %535
  %v537 = vadd.f32 %v491, %v492
  %538 = vadd.xlane.f32.xlu0 %v537
  %v539 = vpop.xlane.xlu0 %538
  %v540 = vadd.f32 %v493, %v494
  %541 = vadd.xlane.f32.xlu0 %v540
  %v542 = vpop.xlane.xlu0 %541
  %v543 = vadd.f32 %v497, 0.0
  %v544 = vadd.f32 %v500, 0.0
  %v545 = vadd.f32 %v503, 0.0
  %v546 = vadd.f32 %v506, 0.0
  %v547 = vadd.f32 %v509, 0.0
  %v548 = vadd.f32 %v512, 0.0
  %v549 = vadd.f32 %v515, 0.0
  %v550 = vadd.f32 %v518, 0.0
  %v551 = vadd.f32 %v521, 0.0
  %v552 = vadd.f32 %v524, 0.0
  %v553 = vadd.f32 %v527, 0.0
  %v554 = vadd.f32 %v530, 0.0
  %v555 = vadd.f32 %v533, 0.0
  %v556 = vadd.f32 %v536, 0.0
  %v557 = vadd.f32 %v539, 0.0
  %v558 = vadd.f32 %v542, 0.0
  %v559 = vld [vmem:[%s430] sm:$0xff]
  %v560 = vld [vmem:[%s430 + $0x8] sm:$0xff]
  %v561 = vld [vmem:[%s430 + $0x10] sm:$0xff]
  %v562 = vld [vmem:[%s430 + $0x18] sm:$0xff]
  %v563 = vld [vmem:[%s430 + $0x20] sm:$0xff]
  %v564 = vld [vmem:[%s430 + $0x28] sm:$0xff]
  %v565 = vld [vmem:[%s430 + $0x30] sm:$0xff]
  %v566 = vld [vmem:[%s430 + $0x38] sm:$0xff]
  %v567 = vld [vmem:[%s430 + $0x40] sm:$0xff]
  %v568 = vld [vmem:[%s430 + $0x48] sm:$0xff]
  %v569 = vld [vmem:[%s430 + $0x50] sm:$0xff]
  %v570 = vld [vmem:[%s430 + $0x58] sm:$0xff]
  %v571 = vld [vmem:[%s430 + $0x60] sm:$0xff]
  %v572 = vld [vmem:[%s430 + $0x68] sm:$0xff]
  %v573 = vld [vmem:[%s430 + $0x70] sm:$0xff]
  %v574 = vld [vmem:[%s430 + $0x78] sm:$0xff]
  %v575 = vld [vmem:[%s430 + $0x80] sm:$0xff]
  %v576 = vld [vmem:[%s430 + $0x88] sm:$0xff]
  %v577 = vld [vmem:[%s430 + $0x90] sm:$0xff]
  %v578 = vld [vmem:[%s430 + $0x98] sm:$0xff]
  %v579 = vld [vmem:[%s430 + $0xa0] sm:$0xff]
  %v580 = vld [vmem:[%s430 + $0xa8] sm:$0xff]
  %v581 = vld [vmem:[%s430 + $0xb0] sm:$0xff]
  %v582 = vld [vmem:[%s430 + $0xb8] sm:$0xff]
  %v583 = vld [vmem:[%s430 + $0xc0] sm:$0xff]
  %v584 = vld [vmem:[%s430 + $0xc8] sm:$0xff]
  %v585 = vld [vmem:[%s430 + $0xd0] sm:$0xff]
  %v586 = vld [vmem:[%s430 + $0xd8] sm:$0xff]
  %v587 = vld [vmem:[%s430 + $0xe0] sm:$0xff]
  %v588 = vld [vmem:[%s430 + $0xe8] sm:$0xff]
  %v589 = vld [vmem:[%s430 + $0xf0] sm:$0xff]
  %v590 = vld [vmem:[%s430 + $0xf8] sm:$0xff]
  %v591 = vadd.f32 %v559, %v560
  %592 = vadd.xlane.f32.xlu0 %v591
  %v593 = vpop.xlane.xlu0 %592
  %v594 = vadd.f32 %v561, %v562
  %595 = vadd.xlane.f32.xlu0 %v594
  %v596 = vpop.xlane.xlu0 %595
  %v597 = vadd.f32 %v563, %v564
  %598 = vadd.xlane.f32.xlu0 %v597
  %v599 = vpop.xlane.xlu0 %598
  %v600 = vadd.f32 %v565, %v566
  %601 = vadd.xlane.f32.xlu0 %v600
  %v602 = vpop.xlane.xlu0 %601
  %v603 = vadd.f32 %v567, %v568
  %604 = vadd.xlane.f32.xlu0 %v603
  %v605 = vpop.xlane.xlu0 %604
  %v606 = vadd.f32 %v569, %v570
  %607 = vadd.xlane.f32.xlu0 %v606
  %v608 = vpop.xlane.xlu0 %607
  %v609 = vadd.f32 %v571, %v572
  %610 = vadd.xlane.f32.xlu0 %v609
  %v611 = vpop.xlane.xlu0 %610
  %v612 = vadd.f32 %v573, %v574
  %613 = vadd.xlane.f32.xlu0 %v612
  %v614 = vpop.xlane.xlu0 %613
  %v615 = vadd.f32 %v575, %v576
  %616 = vadd.xlane.f32.xlu0 %v615
  %v617 = vpop.xlane.xlu0 %616
  %v618 = vadd.f32 %v577, %v578
  %619 = vadd.xlane.f32.xlu0 %v618
  %v620 = vpop.xlane.xlu0 %619
  %v621 = vadd.f32 %v579, %v580
  %622 = vadd.xlane.f32.xlu0 %v621
  %v623 = vpop.xlane.xlu0 %622
  %v624 = vadd.f32 %v581, %v582
  %625 = vadd.xlane.f32.xlu0 %v624
  %v626 = vpop.xlane.xlu0 %625
  %v627 = vadd.f32 %v583, %v584
  %628 = vadd.xlane.f32.xlu0 %v627
  %v629 = vpop.xlane.xlu0 %628
  %v630 = vadd.f32 %v585, %v586
  %631 = vadd.xlane.f32.xlu0 %v630
  %v632 = vpop.xlane.xlu0 %631
  %v633 = vadd.f32 %v587, %v588
  %634 = vadd.xlane.f32.xlu0 %v633
  %v635 = vpop.xlane.xlu0 %634
  %v636 = vadd.f32 %v589, %v590
  %637 = vadd.xlane.f32.xlu0 %v636
  %v638 = vpop.xlane.xlu0 %637
  %v639 = vadd.f32 %v543, %v593
  %v640 = vadd.f32 %v544, %v596
  %v641 = vadd.f32 %v545, %v599
  %v642 = vadd.f32 %v546, %v602
  %v643 = vadd.f32 %v547, %v605
  %v644 = vadd.f32 %v548, %v608
  %v645 = vadd.f32 %v549, %v611
  %v646 = vadd.f32 %v550, %v614
  %v647 = vadd.f32 %v551, %v617
  %v648 = vadd.f32 %v552, %v620
  %v649 = vadd.f32 %v553, %v623
  %v650 = vadd.f32 %v554, %v626
  %v651 = vadd.f32 %v555, %v629
  %v652 = vadd.f32 %v556, %v632
  %v653 = vadd.f32 %v557, %v635
  %v654 = vadd.f32 %v558, %v638
  %v655 = vmul.f32 %v639, 0.001953125
  %v656 = vmul.f32 %v640, 0.001953125
  %v657 = vmul.f32 %v641, 0.001953125
  %v658 = vmul.f32 %v642, 0.001953125
  %v659 = vmul.f32 %v643, 0.001953125
  %v660 = vmul.f32 %v644, 0.001953125
  %v661 = vmul.f32 %v645, 0.001953125
  %v662 = vmul.f32 %v646, 0.001953125
  %v663 = vmul.f32 %v647, 0.001953125
  %v664 = vmul.f32 %v648, 0.001953125
  %v665 = vmul.f32 %v649, 0.001953125
  %v666 = vmul.f32 %v650, 0.001953125
  %v667 = vmul.f32 %v651, 0.001953125
  %v668 = vmul.f32 %v652, 0.001953125
  %v669 = vmul.f32 %v653, 0.001953125
  %v670 = vmul.f32 %v654, 0.001953125
  %v671 = vsub.f32 %v463, %v655
  %v672 = vsub.f32 %v464, %v655
  %v673 = vsub.f32 %v465, %v656
  %v674 = vsub.f32 %v466, %v656
  %v675 = vsub.f32 %v467, %v657
  %v676 = vsub.f32 %v468, %v657
  %v677 = vsub.f32 %v469, %v658
  %v678 = vsub.f32 %v470, %v658
  %v679 = vsub.f32 %v471, %v659
  %v680 = vsub.f32 %v472, %v659
  %v681 = vsub.f32 %v473, %v660
  %v682 = vsub.f32 %v474, %v660
  %v683 = vsub.f32 %v475, %v661
  %v684 = vsub.f32 %v476, %v661
  %v685 = vsub.f32 %v477, %v662
  %v686 = vsub.f32 %v478, %v662
  %v687 = vsub.f32 %v479, %v663
  %v688 = vsub.f32 %v480, %v663
  %v689 = vsub.f32 %v481, %v664
  %v690 = vsub.f32 %v482, %v664
  %v691 = vsub.f32 %v483, %v665
  %v692 = vsub.f32 %v484, %v665
  %v693 = vsub.f32 %v485, %v666
  %v694 = vsub.f32 %v486, %v666
  %v695 = vsub.f32 %v487, %v667
  %v696 = vsub.f32 %v488, %v667
  %v697 = vsub.f32 %v489, %v668
  %v698 = vsub.f32 %v490, %v668
  %v699 = vsub.f32 %v491, %v669
  %v700 = vsub.f32 %v492, %v669
  %v701 = vsub.f32 %v493, %v670
  %v702 = vsub.f32 %v494, %v670
  %v703 = vmul.f32 %v671, %v671
  %v704 = vmul.f32 %v672, %v672
  %v705 = vmul.f32 %v673, %v673
  %v706 = vmul.f32 %v674, %v674
  %v707 = vmul.f32 %v675, %v675
  %v708 = vmul.f32 %v676, %v676
  %v709 = vmul.f32 %v677, %v677
  %v710 = vmul.f32 %v678, %v678
  %v711 = vmul.f32 %v679, %v679
  %v712 = vmul.f32 %v680, %v680
  %v713 = vmul.f32 %v681, %v681
  %v714 = vmul.f32 %v682, %v682
  %v715 = vmul.f32 %v683, %v683
  %v716 = vmul.f32 %v684, %v684
  %v717 = vmul.f32 %v685, %v685
  %v718 = vmul.f32 %v686, %v686
  %v719 = vmul.f32 %v687, %v687
  %v720 = vmul.f32 %v688, %v688
  %v721 = vmul.f32 %v689, %v689
  %v722 = vmul.f32 %v690, %v690
  %v723 = vmul.f32 %v691, %v691
  %v724 = vmul.f32 %v692, %v692
  %v725 = vmul.f32 %v693, %v693
  %v726 = vmul.f32 %v694, %v694
  %v727 = vmul.f32 %v695, %v695
  %v728 = vmul.f32 %v696, %v696
  %v729 = vmul.f32 %v697, %v697
  %v730 = vmul.f32 %v698, %v698
  %v731 = vmul.f32 %v699, %v699
  %v732 = vmul.f32 %v700, %v700
  %v733 = vmul.f32 %v701, %v701
  %v734 = vmul.f32 %v702, %v702
  %v735 = vadd.f32 %v703, %v704
  %736 = vadd.xlane.f32.xlu0 %v735
  %v737 = vpop.xlane.xlu0 %736
  %v738 = vadd.f32 %v705, %v706
  %739 = vadd.xlane.f32.xlu0 %v738
  %v740 = vpop.xlane.xlu0 %739
  %v741 = vadd.f32 %v707, %v708
  %742 = vadd.xlane.f32.xlu0 %v741
  %v743 = vpop.xlane.xlu0 %742
  %v744 = vadd.f32 %v709, %v710
  %745 = vadd.xlane.f32.xlu0 %v744
  %v746 = vpop.xlane.xlu0 %745
  %v747 = vadd.f32 %v711, %v712
  %748 = vadd.xlane.f32.xlu0 %v747
  %v749 = vpop.xlane.xlu0 %748
  %v750 = vadd.f32 %v713, %v714
  %751 = vadd.xlane.f32.xlu0 %v750
  %v752 = vpop.xlane.xlu0 %751
  %v753 = vadd.f32 %v715, %v716
  %754 = vadd.xlane.f32.xlu0 %v753
  %v755 = vpop.xlane.xlu0 %754
  %v756 = vadd.f32 %v717, %v718
  %757 = vadd.xlane.f32.xlu0 %v756
  %v758 = vpop.xlane.xlu0 %757
  %v759 = vadd.f32 %v719, %v720
  %760 = vadd.xlane.f32.xlu0 %v759
  %v761 = vpop.xlane.xlu0 %760
  %v762 = vadd.f32 %v721, %v722
  %763 = vadd.xlane.f32.xlu0 %v762
  %v764 = vpop.xlane.xlu0 %763
  %v765 = vadd.f32 %v723, %v724
  %766 = vadd.xlane.f32.xlu0 %v765
  %v767 = vpop.xlane.xlu0 %766
  %v768 = vadd.f32 %v725, %v726
  %769 = vadd.xlane.f32.xlu0 %v768
  %v770 = vpop.xlane.xlu0 %769
  %v771 = vadd.f32 %v727, %v728
  %772 = vadd.xlane.f32.xlu0 %v771
  %v773 = vpop.xlane.xlu0 %772
  %v774 = vadd.f32 %v729, %v730
  %775 = vadd.xlane.f32.xlu0 %v774
  %v776 = vpop.xlane.xlu0 %775
  %v777 = vadd.f32 %v731, %v732
  %778 = vadd.xlane.f32.xlu0 %v777
  %v779 = vpop.xlane.xlu0 %778
  %v780 = vadd.f32 %v733, %v734
  %781 = vadd.xlane.f32.xlu0 %v780
  %v782 = vpop.xlane.xlu0 %781
  %v783 = vadd.f32 %v737, 0.0
  %v784 = vadd.f32 %v740, 0.0
  %v785 = vadd.f32 %v743, 0.0
  %v786 = vadd.f32 %v746, 0.0
  %v787 = vadd.f32 %v749, 0.0
  %v788 = vadd.f32 %v752, 0.0
  %v789 = vadd.f32 %v755, 0.0
  %v790 = vadd.f32 %v758, 0.0
  %v791 = vadd.f32 %v761, 0.0
  %v792 = vadd.f32 %v764, 0.0
  %v793 = vadd.f32 %v767, 0.0
  %v794 = vadd.f32 %v770, 0.0
  %v795 = vadd.f32 %v773, 0.0
  %v796 = vadd.f32 %v776, 0.0
  %v797 = vadd.f32 %v779, 0.0
  %v798 = vadd.f32 %v782, 0.0
  %v799 = vsub.f32 %v559, %v655
  %v800 = vsub.f32 %v560, %v655
  %v801 = vsub.f32 %v561, %v656
  %v802 = vsub.f32 %v562, %v656
  %v803 = vsub.f32 %v563, %v657
  %v804 = vsub.f32 %v564, %v657
  %v805 = vsub.f32 %v565, %v658
  %v806 = vsub.f32 %v566, %v658
  %v807 = vsub.f32 %v567, %v659
  %v808 = vsub.f32 %v568, %v659
  %v809 = vsub.f32 %v569, %v660
  %v810 = vsub.f32 %v570, %v660
  %v811 = vsub.f32 %v571, %v661
  %v812 = vsub.f32 %v572, %v661
  %v813 = vsub.f32 %v573, %v662
  %v814 = vsub.f32 %v574, %v662
  %v815 = vsub.f32 %v575, %v663
  %v816 = vsub.f32 %v576, %v663
  %v817 = vsub.f32 %v577, %v664
  %v818 = vsub.f32 %v578, %v664
  %v819 = vsub.f32 %v579, %v665
  %v820 = vsub.f32 %v580, %v665
  %v821 = vsub.f32 %v581, %v666
  %v822 = vsub.f32 %v582, %v666
  %v823 = vsub.f32 %v583, %v667
  %v824 = vsub.f32 %v584, %v667
  %v825 = vsub.f32 %v585, %v668
  %v826 = vsub.f32 %v586, %v668
  %v827 = vsub.f32 %v587, %v669
  %v828 = vsub.f32 %v588, %v669
  %v829 = vsub.f32 %v589, %v670
  %v830 = vsub.f32 %v590, %v670
  %v831 = vmul.f32 %v799, %v799
  %v832 = vmul.f32 %v800, %v800
  %v833 = vmul.f32 %v801, %v801
  %v834 = vmul.f32 %v802, %v802
  %v835 = vmul.f32 %v803, %v803
  %v836 = vmul.f32 %v804, %v804
  %v837 = vmul.f32 %v805, %v805
  %v838 = vmul.f32 %v806, %v806
  %v839 = vmul.f32 %v807, %v807
  %v840 = vmul.f32 %v808, %v808
  %v841 = vmul.f32 %v809, %v809
  %v842 = vmul.f32 %v810, %v810
  %v843 = vmul.f32 %v811, %v811
  %v844 = vmul.f32 %v812, %v812
  %v845 = vmul.f32 %v813, %v813
  %v846 = vmul.f32 %v814, %v814
  %v847 = vmul.f32 %v815, %v815
  %v848 = vmul.f32 %v816, %v816
  %v849 = vmul.f32 %v817, %v817
  %v850 = vmul.f32 %v818, %v818
  %v851 = vmul.f32 %v819, %v819
  %v852 = vmul.f32 %v820, %v820
  %v853 = vmul.f32 %v821, %v821
  %v854 = vmul.f32 %v822, %v822
  %v855 = vmul.f32 %v823, %v823
  %v856 = vmul.f32 %v824, %v824
  %v857 = vmul.f32 %v825, %v825
  %v858 = vmul.f32 %v826, %v826
  %v859 = vmul.f32 %v827, %v827
  %v860 = vmul.f32 %v828, %v828
  %v861 = vmul.f32 %v829, %v829
  %v862 = vmul.f32 %v830, %v830
  %v863 = vadd.f32 %v831, %v832
  %864 = vadd.xlane.f32.xlu0 %v863
  %v865 = vpop.xlane.xlu0 %864
  %v866 = vadd.f32 %v833, %v834
  %867 = vadd.xlane.f32.xlu0 %v866
  %v868 = vpop.xlane.xlu0 %867
  %v869 = vadd.f32 %v835, %v836
  %870 = vadd.xlane.f32.xlu0 %v869
  %v871 = vpop.xlane.xlu0 %870
  %v872 = vadd.f32 %v837, %v838
  %873 = vadd.xlane.f32.xlu0 %v872
  %v874 = vpop.xlane.xlu0 %873
  %v875 = vadd.f32 %v839, %v840
  %876 = vadd.xlane.f32.xlu0 %v875
  %v877 = vpop.xlane.xlu0 %876
  %v878 = vadd.f32 %v841, %v842
  %879 = vadd.xlane.f32.xlu0 %v878
  %v880 = vpop.xlane.xlu0 %879
  %v881 = vadd.f32 %v843, %v844
  %882 = vadd.xlane.f32.xlu0 %v881
  %v883 = vpop.xlane.xlu0 %882
  %v884 = vadd.f32 %v845, %v846
  %885 = vadd.xlane.f32.xlu0 %v884
  %v886 = vpop.xlane.xlu0 %885
  %v887 = vadd.f32 %v847, %v848
  %888 = vadd.xlane.f32.xlu0 %v887
  %v889 = vpop.xlane.xlu0 %888
  %v890 = vadd.f32 %v849, %v850
  %891 = vadd.xlane.f32.xlu0 %v890
  %v892 = vpop.xlane.xlu0 %891
  %v893 = vadd.f32 %v851, %v852
  %894 = vadd.xlane.f32.xlu0 %v893
  %v895 = vpop.xlane.xlu0 %894
  %v896 = vadd.f32 %v853, %v854
  %897 = vadd.xlane.f32.xlu0 %v896
  %v898 = vpop.xlane.xlu0 %897
  %v899 = vadd.f32 %v855, %v856
  %900 = vadd.xlane.f32.xlu0 %v899
  %v901 = vpop.xlane.xlu0 %900
  %v902 = vadd.f32 %v857, %v858
  %903 = vadd.xlane.f32.xlu0 %v902
  %v904 = vpop.xlane.xlu0 %903
  %v905 = vadd.f32 %v859, %v860
  %906 = vadd.xlane.f32.xlu0 %v905
  %v907 = vpop.xlane.xlu0 %906
  %v908 = vadd.f32 %v861, %v862
  %909 = vadd.xlane.f32.xlu0 %v908
  %v910 = vpop.xlane.xlu0 %909
  %v911 = vadd.f32 %v783, %v865
  %v912 = vadd.f32 %v784, %v868
  %v913 = vadd.f32 %v785, %v871
  %v914 = vadd.f32 %v786, %v874
  %v915 = vadd.f32 %v787, %v877
  %v916 = vadd.f32 %v788, %v880
  %v917 = vadd.f32 %v789, %v883
  %v918 = vadd.f32 %v790, %v886
  %v919 = vadd.f32 %v791, %v889
  %v920 = vadd.f32 %v792, %v892
  %v921 = vadd.f32 %v793, %v895
  %v922 = vadd.f32 %v794, %v898
  %v923 = vadd.f32 %v795, %v901
  %v924 = vadd.f32 %v796, %v904
  %v925 = vadd.f32 %v797, %v907
  %v926 = vadd.f32 %v798, %v910
  %v927 = vmul.f32 %v911, 0.001953125
  %v928 = vmul.f32 %v912, 0.001953125
  %v929 = vmul.f32 %v913, 0.001953125
  %v930 = vmul.f32 %v914, 0.001953125
  %v931 = vmul.f32 %v915, 0.001953125
  %v932 = vmul.f32 %v916, 0.001953125
  %v933 = vmul.f32 %v917, 0.001953125
  %v934 = vmul.f32 %v918, 0.001953125
  %v935 = vmul.f32 %v919, 0.001953125
  %v936 = vmul.f32 %v920, 0.001953125
  %v937 = vmul.f32 %v921, 0.001953125
  %v938 = vmul.f32 %v922, 0.001953125
  %v939 = vmul.f32 %v923, 0.001953125
  %v940 = vmul.f32 %v924, 0.001953125
  %v941 = vmul.f32 %v925, 0.001953125
  %v942 = vmul.f32 %v926, 0.001953125
  %v943 = vadd.f32 %v927, 1e-05
  %v944 = vadd.f32 %v928, 1e-05
  %v945 = vadd.f32 %v929, 1e-05
  %v946 = vadd.f32 %v930, 1e-05
  %v947 = vadd.f32 %v931, 1e-05
  %v948 = vadd.f32 %v932, 1e-05
  %v949 = vadd.f32 %v933, 1e-05
  %v950 = vadd.f32 %v934, 1e-05
  %v951 = vadd.f32 %v935, 1e-05
  %v952 = vadd.f32 %v936, 1e-05
  %v953 = vadd.f32 %v937, 1e-05
  %v954 = vadd.f32 %v938, 1e-05
  %v955 = vadd.f32 %v939, 1e-05
  %v956 = vadd.f32 %v940, 1e-05
  %v957 = vadd.f32 %v941, 1e-05
  %v958 = vadd.f32 %v942, 1e-05
  %v959 = vrsqrt.pop %v943
  %v960 = vrsqrt.pop %v944
  %v961 = vrsqrt.pop %v945
  %v962 = vrsqrt.pop %v946
  %v963 = vrsqrt.pop %v947
  %v964 = vrsqrt.pop %v948
  %v965 = vrsqrt.pop %v949
  %v966 = vrsqrt.pop %v950
  %v967 = vrsqrt.pop %v951
  %v968 = vrsqrt.pop %v952
  %v969 = vrsqrt.pop %v953
  %v970 = vrsqrt.pop %v954
  %v971 = vrsqrt.pop %v955
  %v972 = vrsqrt.pop %v956
  %v973 = vrsqrt.pop %v957
  %v974 = vrsqrt.pop %v958
  %v975 = vld [vmem:[%s2] sm:$0xff]
  %v976 = vld [vmem:[%s2 + $0x8] sm:$0xff]
  %v977 = vld [vmem:[%s2 + $0x10] sm:$0xff]
  %v978 = vld [vmem:[%s2 + $0x18] sm:$0xff]
  %v979 = vld [vmem:[%s2 + $0x20] sm:$0xff]
  %v980 = vld [vmem:[%s2 + $0x28] sm:$0xff]
  %v981 = vld [vmem:[%s2 + $0x30] sm:$0xff]
  %v982 = vld [vmem:[%s2 + $0x38] sm:$0xff]
  %v983 = vld [vmem:[%s2 + $0x40] sm:$0xff]
  %v984 = vld [vmem:[%s2 + $0x48] sm:$0xff]
  %v985 = vld [vmem:[%s2 + $0x50] sm:$0xff]
  %v986 = vld [vmem:[%s2 + $0x58] sm:$0xff]
  %v987 = vld [vmem:[%s2 + $0x60] sm:$0xff]
  %v988 = vld [vmem:[%s2 + $0x68] sm:$0xff]
  %v989 = vld [vmem:[%s2 + $0x70] sm:$0xff]
  %v990 = vld [vmem:[%s2 + $0x78] sm:$0xff]
  %v991 = vmul.f32 %v975, %v959
  %v992 = vmul.f32 %v976, %v960
  %v993 = vmul.f32 %v977, %v961
  %v994 = vmul.f32 %v978, %v962
  %v995 = vmul.f32 %v979, %v963
  %v996 = vmul.f32 %v980, %v964
  %v997 = vmul.f32 %v981, %v965
  %v998 = vmul.f32 %v982, %v966
  %v999 = vmul.f32 %v983, %v967
  %v1000 = vmul.f32 %v984, %v968
  %v1001 = vmul.f32 %v985, %v969
  %v1002 = vmul.f32 %v986, %v970
  %v1003 = vmul.f32 %v987, %v971
  %v1004 = vmul.f32 %v988, %v972
  %v1005 = vmul.f32 %v989, %v973
  %v1006 = vmul.f32 %v990, %v974
  %v1007 = vld [vmem:[%s3] sm:$0xff]
  %v1008 = vld [vmem:[%s3 + $0x8] sm:$0xff]
  %v1009 = vld [vmem:[%s3 + $0x10] sm:$0xff]
  %v1010 = vld [vmem:[%s3 + $0x18] sm:$0xff]
  %v1011 = vld [vmem:[%s3 + $0x20] sm:$0xff]
  %v1012 = vld [vmem:[%s3 + $0x28] sm:$0xff]
  %v1013 = vld [vmem:[%s3 + $0x30] sm:$0xff]
  %v1014 = vld [vmem:[%s3 + $0x38] sm:$0xff]
  %v1015 = vld [vmem:[%s3 + $0x40] sm:$0xff]
  %v1016 = vld [vmem:[%s3 + $0x48] sm:$0xff]
  %v1017 = vld [vmem:[%s3 + $0x50] sm:$0xff]
  %v1018 = vld [vmem:[%s3 + $0x58] sm:$0xff]
  %v1019 = vld [vmem:[%s3 + $0x60] sm:$0xff]
  %v1020 = vld [vmem:[%s3 + $0x68] sm:$0xff]
  %v1021 = vld [vmem:[%s3 + $0x70] sm:$0xff]
  %v1022 = vld [vmem:[%s3 + $0x78] sm:$0xff]
  %v1023 = vmul.f32 %v655, %v991
  %v1024 = vmul.f32 %v656, %v992
  %v1025 = vmul.f32 %v657, %v993
  %v1026 = vmul.f32 %v658, %v994
  %v1027 = vmul.f32 %v659, %v995
  %v1028 = vmul.f32 %v660, %v996
  %v1029 = vmul.f32 %v661, %v997
  %v1030 = vmul.f32 %v662, %v998
  %v1031 = vmul.f32 %v663, %v999
  %v1032 = vmul.f32 %v664, %v1000
  %v1033 = vmul.f32 %v665, %v1001
  %v1034 = vmul.f32 %v666, %v1002
  %v1035 = vmul.f32 %v667, %v1003
  %v1036 = vmul.f32 %v668, %v1004
  %v1037 = vmul.f32 %v669, %v1005
  %v1038 = vmul.f32 %v670, %v1006
  %v1039 = vsub.f32 %v1007, %v1023
  %v1040 = vsub.f32 %v1008, %v1024
  %v1041 = vsub.f32 %v1009, %v1025
  %v1042 = vsub.f32 %v1010, %v1026
  %v1043 = vsub.f32 %v1011, %v1027
  %v1044 = vsub.f32 %v1012, %v1028
  %v1045 = vsub.f32 %v1013, %v1029
  %v1046 = vsub.f32 %v1014, %v1030
  %v1047 = vsub.f32 %v1015, %v1031
  %v1048 = vsub.f32 %v1016, %v1032
  %v1049 = vsub.f32 %v1017, %v1033
  %v1050 = vsub.f32 %v1018, %v1034
  %v1051 = vsub.f32 %v1019, %v1035
  %v1052 = vsub.f32 %v1020, %v1036
  %v1053 = vsub.f32 %v1021, %v1037
  %v1054 = vsub.f32 %v1022, %v1038
  %1056 = vset.pattern.permute.xlu0 0
  %1057 = vperm.xlu0 %1056, %v991
  %v1058 = vpop.permute.xlu0 %1057
  %1061 = vset.pattern.permute.xlu0 0
  %1062 = vperm.xlu0 %1061, %v992
  %v1063 = vpop.permute.xlu0 %1062
  %1066 = vset.pattern.permute.xlu0 0
  %1067 = vperm.xlu0 %1066, %v993
  %v1068 = vpop.permute.xlu0 %1067
  %1071 = vset.pattern.permute.xlu0 0
  %1072 = vperm.xlu0 %1071, %v994
  %v1073 = vpop.permute.xlu0 %1072
  %1076 = vset.pattern.permute.xlu0 0
  %1077 = vperm.xlu0 %1076, %v995
  %v1078 = vpop.permute.xlu0 %1077
  %1081 = vset.pattern.permute.xlu0 0
  %1082 = vperm.xlu0 %1081, %v996
  %v1083 = vpop.permute.xlu0 %1082
  %1086 = vset.pattern.permute.xlu0 0
  %1087 = vperm.xlu0 %1086, %v997
  %v1088 = vpop.permute.xlu0 %1087
  %1091 = vset.pattern.permute.xlu0 0
  %1092 = vperm.xlu0 %1091, %v998
  %v1093 = vpop.permute.xlu0 %1092
  %1096 = vset.pattern.permute.xlu0 0
  %1097 = vperm.xlu0 %1096, %v999
  %v1098 = vpop.permute.xlu0 %1097
  %1101 = vset.pattern.permute.xlu0 0
  %1102 = vperm.xlu0 %1101, %v1000
  %v1103 = vpop.permute.xlu0 %1102
  %1106 = vset.pattern.permute.xlu0 0
  %1107 = vperm.xlu0 %1106, %v1001
  %v1108 = vpop.permute.xlu0 %1107
  %1111 = vset.pattern.permute.xlu0 0
  %1112 = vperm.xlu0 %1111, %v1002
  %v1113 = vpop.permute.xlu0 %1112
  %1116 = vset.pattern.permute.xlu0 0
  %1117 = vperm.xlu0 %1116, %v1003
  %v1118 = vpop.permute.xlu0 %1117
  %1121 = vset.pattern.permute.xlu0 0
  %1122 = vperm.xlu0 %1121, %v1004
  %v1123 = vpop.permute.xlu0 %1122
  %1126 = vset.pattern.permute.xlu0 0
  %1127 = vperm.xlu0 %1126, %v1005
  %v1128 = vpop.permute.xlu0 %1127
  %1131 = vset.pattern.permute.xlu0 0
  %1132 = vperm.xlu0 %1131, %v1006
  %v1133 = vpop.permute.xlu0 %1132
  %v1135 = vmul.f32 %v463, %v1058
  %v1136 = vmul.f32 %v464, %v1058
  %v1137 = vmul.f32 %v465, %v1063
  %v1138 = vmul.f32 %v466, %v1063
  %v1139 = vmul.f32 %v467, %v1068
  %v1140 = vmul.f32 %v468, %v1068
  %v1141 = vmul.f32 %v469, %v1073
  %v1142 = vmul.f32 %v470, %v1073
  %v1143 = vmul.f32 %v471, %v1078
  %v1144 = vmul.f32 %v472, %v1078
  %v1145 = vmul.f32 %v473, %v1083
  %v1146 = vmul.f32 %v474, %v1083
  %v1147 = vmul.f32 %v475, %v1088
  %v1148 = vmul.f32 %v476, %v1088
  %v1149 = vmul.f32 %v477, %v1093
  %v1150 = vmul.f32 %v478, %v1093
  %v1151 = vmul.f32 %v479, %v1098
  %v1152 = vmul.f32 %v480, %v1098
  %v1153 = vmul.f32 %v481, %v1103
  %v1154 = vmul.f32 %v482, %v1103
  %v1155 = vmul.f32 %v483, %v1108
  %v1156 = vmul.f32 %v484, %v1108
  %v1157 = vmul.f32 %v485, %v1113
  %v1158 = vmul.f32 %v486, %v1113
  %v1159 = vmul.f32 %v487, %v1118
  %v1160 = vmul.f32 %v488, %v1118
  %v1161 = vmul.f32 %v489, %v1123
  %v1162 = vmul.f32 %v490, %v1123
  %v1163 = vmul.f32 %v491, %v1128
  %v1164 = vmul.f32 %v492, %v1128
  %v1165 = vmul.f32 %v493, %v1133
  %v1166 = vmul.f32 %v494, %v1133
  %1168 = vset.pattern.permute.xlu0 0
  %1169 = vperm.xlu0 %1168, %v1039
  %v1170 = vpop.permute.xlu0 %1169
  %1173 = vset.pattern.permute.xlu0 0
  %1174 = vperm.xlu0 %1173, %v1040
  %v1175 = vpop.permute.xlu0 %1174
  %1178 = vset.pattern.permute.xlu0 0
  %1179 = vperm.xlu0 %1178, %v1041
  %v1180 = vpop.permute.xlu0 %1179
  %1183 = vset.pattern.permute.xlu0 0
  %1184 = vperm.xlu0 %1183, %v1042
  %v1185 = vpop.permute.xlu0 %1184
  %1188 = vset.pattern.permute.xlu0 0
  %1189 = vperm.xlu0 %1188, %v1043
  %v1190 = vpop.permute.xlu0 %1189
  %1193 = vset.pattern.permute.xlu0 0
  %1194 = vperm.xlu0 %1193, %v1044
  %v1195 = vpop.permute.xlu0 %1194
  %1198 = vset.pattern.permute.xlu0 0
  %1199 = vperm.xlu0 %1198, %v1045
  %v1200 = vpop.permute.xlu0 %1199
  %1203 = vset.pattern.permute.xlu0 0
  %1204 = vperm.xlu0 %1203, %v1046
  %v1205 = vpop.permute.xlu0 %1204
  %1208 = vset.pattern.permute.xlu0 0
  %1209 = vperm.xlu0 %1208, %v1047
  %v1210 = vpop.permute.xlu0 %1209
  %1213 = vset.pattern.permute.xlu0 0
  %1214 = vperm.xlu0 %1213, %v1048
  %v1215 = vpop.permute.xlu0 %1214
  %1218 = vset.pattern.permute.xlu0 0
  %1219 = vperm.xlu0 %1218, %v1049
  %v1220 = vpop.permute.xlu0 %1219
  %1223 = vset.pattern.permute.xlu0 0
  %1224 = vperm.xlu0 %1223, %v1050
  %v1225 = vpop.permute.xlu0 %1224
  %1228 = vset.pattern.permute.xlu0 0
  %1229 = vperm.xlu0 %1228, %v1051
  %v1230 = vpop.permute.xlu0 %1229
  %1233 = vset.pattern.permute.xlu0 0
  %1234 = vperm.xlu0 %1233, %v1052
  %v1235 = vpop.permute.xlu0 %1234
  %1238 = vset.pattern.permute.xlu0 0
  %1239 = vperm.xlu0 %1238, %v1053
  %v1240 = vpop.permute.xlu0 %1239
  %1243 = vset.pattern.permute.xlu0 0
  %1244 = vperm.xlu0 %1243, %v1054
  %v1245 = vpop.permute.xlu0 %1244
  %v1247 = vadd.f32 %v1135, %v1170
  %v1248 = vadd.f32 %v1136, %v1170
  %v1249 = vadd.f32 %v1137, %v1175
  %v1250 = vadd.f32 %v1138, %v1175
  %v1251 = vadd.f32 %v1139, %v1180
  %v1252 = vadd.f32 %v1140, %v1180
  %v1253 = vadd.f32 %v1141, %v1185
  %v1254 = vadd.f32 %v1142, %v1185
  %v1255 = vadd.f32 %v1143, %v1190
  %v1256 = vadd.f32 %v1144, %v1190
  %v1257 = vadd.f32 %v1145, %v1195
  %v1258 = vadd.f32 %v1146, %v1195
  %v1259 = vadd.f32 %v1147, %v1200
  %v1260 = vadd.f32 %v1148, %v1200
  %v1261 = vadd.f32 %v1149, %v1205
  %v1262 = vadd.f32 %v1150, %v1205
  %v1263 = vadd.f32 %v1151, %v1210
  %v1264 = vadd.f32 %v1152, %v1210
  %v1265 = vadd.f32 %v1153, %v1215
  %v1266 = vadd.f32 %v1154, %v1215
  %v1267 = vadd.f32 %v1155, %v1220
  %v1268 = vadd.f32 %v1156, %v1220
  %v1269 = vadd.f32 %v1157, %v1225
  %v1270 = vadd.f32 %v1158, %v1225
  %v1271 = vadd.f32 %v1159, %v1230
  %v1272 = vadd.f32 %v1160, %v1230
  %v1273 = vadd.f32 %v1161, %v1235
  %v1274 = vadd.f32 %v1162, %v1235
  %v1275 = vadd.f32 %v1163, %v1240
  %v1276 = vadd.f32 %v1164, %v1240
  %v1277 = vadd.f32 %v1165, %v1245
  %v1278 = vadd.f32 %v1166, %v1245
  %v1279 = vmax.f32 %v1247, 0.0
  %v1280 = vmax.f32 %v1248, 0.0
  %v1281 = vmax.f32 %v1249, 0.0
  %v1282 = vmax.f32 %v1250, 0.0
  %v1283 = vmax.f32 %v1251, 0.0
  %v1284 = vmax.f32 %v1252, 0.0
  %v1285 = vmax.f32 %v1253, 0.0
  %v1286 = vmax.f32 %v1254, 0.0
  %v1287 = vmax.f32 %v1255, 0.0
  %v1288 = vmax.f32 %v1256, 0.0
  %v1289 = vmax.f32 %v1257, 0.0
  %v1290 = vmax.f32 %v1258, 0.0
  %v1291 = vmax.f32 %v1259, 0.0
  %v1292 = vmax.f32 %v1260, 0.0
  %v1293 = vmax.f32 %v1261, 0.0
  %v1294 = vmax.f32 %v1262, 0.0
  %v1295 = vmax.f32 %v1263, 0.0
  %v1296 = vmax.f32 %v1264, 0.0
  %v1297 = vmax.f32 %v1265, 0.0
  %v1298 = vmax.f32 %v1266, 0.0
  %v1299 = vmax.f32 %v1267, 0.0
  %v1300 = vmax.f32 %v1268, 0.0
  %v1301 = vmax.f32 %v1269, 0.0
  %v1302 = vmax.f32 %v1270, 0.0
  %v1303 = vmax.f32 %v1271, 0.0
  %v1304 = vmax.f32 %v1272, 0.0
  %v1305 = vmax.f32 %v1273, 0.0
  %v1306 = vmax.f32 %v1274, 0.0
  %v1307 = vmax.f32 %v1275, 0.0
  %v1308 = vmax.f32 %v1276, 0.0
  %v1309 = vmax.f32 %v1277, 0.0
  %v1310 = vmax.f32 %v1278, 0.0
  %1311 = vst [vmem:[%s4] sm:$0xff] %v1279
  %1312 = vst [vmem:[%s4 + $0x8] sm:$0xff] %v1280
  %1313 = vst [vmem:[%s4 + $0x10] sm:$0xff] %v1281
  %1314 = vst [vmem:[%s4 + $0x18] sm:$0xff] %v1282
  %1315 = vst [vmem:[%s4 + $0x20] sm:$0xff] %v1283
  %1316 = vst [vmem:[%s4 + $0x28] sm:$0xff] %v1284
  %1317 = vst [vmem:[%s4 + $0x30] sm:$0xff] %v1285
  %1318 = vst [vmem:[%s4 + $0x38] sm:$0xff] %v1286
  %1319 = vst [vmem:[%s4 + $0x40] sm:$0xff] %v1287
  %1320 = vst [vmem:[%s4 + $0x48] sm:$0xff] %v1288
  %1321 = vst [vmem:[%s4 + $0x50] sm:$0xff] %v1289
  %1322 = vst [vmem:[%s4 + $0x58] sm:$0xff] %v1290
  %1323 = vst [vmem:[%s4 + $0x60] sm:$0xff] %v1291
  %1324 = vst [vmem:[%s4 + $0x68] sm:$0xff] %v1292
  %1325 = vst [vmem:[%s4 + $0x70] sm:$0xff] %v1293
  %1326 = vst [vmem:[%s4 + $0x78] sm:$0xff] %v1294
  %1327 = vst [vmem:[%s4 + $0x80] sm:$0xff] %v1295
  %1328 = vst [vmem:[%s4 + $0x88] sm:$0xff] %v1296
  %1329 = vst [vmem:[%s4 + $0x90] sm:$0xff] %v1297
  %1330 = vst [vmem:[%s4 + $0x98] sm:$0xff] %v1298
  %1331 = vst [vmem:[%s4 + $0xa0] sm:$0xff] %v1299
  %1332 = vst [vmem:[%s4 + $0xa8] sm:$0xff] %v1300
  %1333 = vst [vmem:[%s4 + $0xb0] sm:$0xff] %v1301
  %1334 = vst [vmem:[%s4 + $0xb8] sm:$0xff] %v1302
  %1335 = vst [vmem:[%s4 + $0xc0] sm:$0xff] %v1303
  %1336 = vst [vmem:[%s4 + $0xc8] sm:$0xff] %v1304
  %1337 = vst [vmem:[%s4 + $0xd0] sm:$0xff] %v1305
  %1338 = vst [vmem:[%s4 + $0xd8] sm:$0xff] %v1306
  %1339 = vst [vmem:[%s4 + $0xe0] sm:$0xff] %v1307
  %1340 = vst [vmem:[%s4 + $0xe8] sm:$0xff] %v1308
  %1341 = vst [vmem:[%s4 + $0xf0] sm:$0xff] %v1309
  %1342 = vst [vmem:[%s4 + $0xf8] sm:$0xff] %v1310
  %v1343 = vld [vmem:[%s430] sm:$0xff]
  %v1344 = vld [vmem:[%s430 + $0x8] sm:$0xff]
  %v1345 = vld [vmem:[%s430 + $0x10] sm:$0xff]
  %v1346 = vld [vmem:[%s430 + $0x18] sm:$0xff]
  %v1347 = vld [vmem:[%s430 + $0x20] sm:$0xff]
  %v1348 = vld [vmem:[%s430 + $0x28] sm:$0xff]
  %v1349 = vld [vmem:[%s430 + $0x30] sm:$0xff]
  %v1350 = vld [vmem:[%s430 + $0x38] sm:$0xff]
  %v1351 = vld [vmem:[%s430 + $0x40] sm:$0xff]
  %v1352 = vld [vmem:[%s430 + $0x48] sm:$0xff]
  %v1353 = vld [vmem:[%s430 + $0x50] sm:$0xff]
  %v1354 = vld [vmem:[%s430 + $0x58] sm:$0xff]
  %v1355 = vld [vmem:[%s430 + $0x60] sm:$0xff]
  %v1356 = vld [vmem:[%s430 + $0x68] sm:$0xff]
  %v1357 = vld [vmem:[%s430 + $0x70] sm:$0xff]
  %v1358 = vld [vmem:[%s430 + $0x78] sm:$0xff]
  %v1359 = vld [vmem:[%s430 + $0x80] sm:$0xff]
  %v1360 = vld [vmem:[%s430 + $0x88] sm:$0xff]
  %v1361 = vld [vmem:[%s430 + $0x90] sm:$0xff]
  %v1362 = vld [vmem:[%s430 + $0x98] sm:$0xff]
  %v1363 = vld [vmem:[%s430 + $0xa0] sm:$0xff]
  %v1364 = vld [vmem:[%s430 + $0xa8] sm:$0xff]
  %v1365 = vld [vmem:[%s430 + $0xb0] sm:$0xff]
  %v1366 = vld [vmem:[%s430 + $0xb8] sm:$0xff]
  %v1367 = vld [vmem:[%s430 + $0xc0] sm:$0xff]
  %v1368 = vld [vmem:[%s430 + $0xc8] sm:$0xff]
  %v1369 = vld [vmem:[%s430 + $0xd0] sm:$0xff]
  %v1370 = vld [vmem:[%s430 + $0xd8] sm:$0xff]
  %v1371 = vld [vmem:[%s430 + $0xe0] sm:$0xff]
  %v1372 = vld [vmem:[%s430 + $0xe8] sm:$0xff]
  %v1373 = vld [vmem:[%s430 + $0xf0] sm:$0xff]
  %v1374 = vld [vmem:[%s430 + $0xf8] sm:$0xff]
  %v1375 = vmul.f32 %v1343, %v1058
  %v1376 = vmul.f32 %v1344, %v1058
  %v1377 = vmul.f32 %v1345, %v1063
  %v1378 = vmul.f32 %v1346, %v1063
  %v1379 = vmul.f32 %v1347, %v1068
  %v1380 = vmul.f32 %v1348, %v1068
  %v1381 = vmul.f32 %v1349, %v1073
  %v1382 = vmul.f32 %v1350, %v1073
  %v1383 = vmul.f32 %v1351, %v1078
  %v1384 = vmul.f32 %v1352, %v1078
  %v1385 = vmul.f32 %v1353, %v1083
  %v1386 = vmul.f32 %v1354, %v1083
  %v1387 = vmul.f32 %v1355, %v1088
  %v1388 = vmul.f32 %v1356, %v1088
  %v1389 = vmul.f32 %v1357, %v1093
  %v1390 = vmul.f32 %v1358, %v1093
  %v1391 = vmul.f32 %v1359, %v1098
  %v1392 = vmul.f32 %v1360, %v1098
  %v1393 = vmul.f32 %v1361, %v1103
  %v1394 = vmul.f32 %v1362, %v1103
  %v1395 = vmul.f32 %v1363, %v1108
  %v1396 = vmul.f32 %v1364, %v1108
  %v1397 = vmul.f32 %v1365, %v1113
  %v1398 = vmul.f32 %v1366, %v1113
  %v1399 = vmul.f32 %v1367, %v1118
  %v1400 = vmul.f32 %v1368, %v1118
  %v1401 = vmul.f32 %v1369, %v1123
  %v1402 = vmul.f32 %v1370, %v1123
  %v1403 = vmul.f32 %v1371, %v1128
  %v1404 = vmul.f32 %v1372, %v1128
  %v1405 = vmul.f32 %v1373, %v1133
  %v1406 = vmul.f32 %v1374, %v1133
  %v1407 = vadd.f32 %v1375, %v1170
  %v1408 = vadd.f32 %v1376, %v1170
  %v1409 = vadd.f32 %v1377, %v1175
  %v1410 = vadd.f32 %v1378, %v1175
  %v1411 = vadd.f32 %v1379, %v1180
  %v1412 = vadd.f32 %v1380, %v1180
  %v1413 = vadd.f32 %v1381, %v1185
  %v1414 = vadd.f32 %v1382, %v1185
  %v1415 = vadd.f32 %v1383, %v1190
  %v1416 = vadd.f32 %v1384, %v1190
  %v1417 = vadd.f32 %v1385, %v1195
  %v1418 = vadd.f32 %v1386, %v1195
  %v1419 = vadd.f32 %v1387, %v1200
  %v1420 = vadd.f32 %v1388, %v1200
  %v1421 = vadd.f32 %v1389, %v1205
  %v1422 = vadd.f32 %v1390, %v1205
  %v1423 = vadd.f32 %v1391, %v1210
  %v1424 = vadd.f32 %v1392, %v1210
  %v1425 = vadd.f32 %v1393, %v1215
  %v1426 = vadd.f32 %v1394, %v1215
  %v1427 = vadd.f32 %v1395, %v1220
  %v1428 = vadd.f32 %v1396, %v1220
  %v1429 = vadd.f32 %v1397, %v1225
  %v1430 = vadd.f32 %v1398, %v1225
  %v1431 = vadd.f32 %v1399, %v1230
  %v1432 = vadd.f32 %v1400, %v1230
  %v1433 = vadd.f32 %v1401, %v1235
  %v1434 = vadd.f32 %v1402, %v1235
  %v1435 = vadd.f32 %v1403, %v1240
  %v1436 = vadd.f32 %v1404, %v1240
  %v1437 = vadd.f32 %v1405, %v1245
  %v1438 = vadd.f32 %v1406, %v1245
  %v1439 = vmax.f32 %v1407, 0.0
  %v1440 = vmax.f32 %v1408, 0.0
  %v1441 = vmax.f32 %v1409, 0.0
  %v1442 = vmax.f32 %v1410, 0.0
  %v1443 = vmax.f32 %v1411, 0.0
  %v1444 = vmax.f32 %v1412, 0.0
  %v1445 = vmax.f32 %v1413, 0.0
  %v1446 = vmax.f32 %v1414, 0.0
  %v1447 = vmax.f32 %v1415, 0.0
  %v1448 = vmax.f32 %v1416, 0.0
  %v1449 = vmax.f32 %v1417, 0.0
  %v1450 = vmax.f32 %v1418, 0.0
  %v1451 = vmax.f32 %v1419, 0.0
  %v1452 = vmax.f32 %v1420, 0.0
  %v1453 = vmax.f32 %v1421, 0.0
  %v1454 = vmax.f32 %v1422, 0.0
  %v1455 = vmax.f32 %v1423, 0.0
  %v1456 = vmax.f32 %v1424, 0.0
  %v1457 = vmax.f32 %v1425, 0.0
  %v1458 = vmax.f32 %v1426, 0.0
  %v1459 = vmax.f32 %v1427, 0.0
  %v1460 = vmax.f32 %v1428, 0.0
  %v1461 = vmax.f32 %v1429, 0.0
  %v1462 = vmax.f32 %v1430, 0.0
  %v1463 = vmax.f32 %v1431, 0.0
  %v1464 = vmax.f32 %v1432, 0.0
  %v1465 = vmax.f32 %v1433, 0.0
  %v1466 = vmax.f32 %v1434, 0.0
  %v1467 = vmax.f32 %v1435, 0.0
  %v1468 = vmax.f32 %v1436, 0.0
  %v1469 = vmax.f32 %v1437, 0.0
  %v1470 = vmax.f32 %v1438, 0.0
  %s1471 = scalar_lea.vmem %s4, 256
  %1472 = vst [vmem:[%s1471] sm:$0xff] %v1439
  %1473 = vst [vmem:[%s1471 + $0x8] sm:$0xff] %v1440
  %1474 = vst [vmem:[%s1471 + $0x10] sm:$0xff] %v1441
  %1475 = vst [vmem:[%s1471 + $0x18] sm:$0xff] %v1442
  %1476 = vst [vmem:[%s1471 + $0x20] sm:$0xff] %v1443
  %1477 = vst [vmem:[%s1471 + $0x28] sm:$0xff] %v1444
  %1478 = vst [vmem:[%s1471 + $0x30] sm:$0xff] %v1445
  %1479 = vst [vmem:[%s1471 + $0x38] sm:$0xff] %v1446
  %1480 = vst [vmem:[%s1471 + $0x40] sm:$0xff] %v1447
  %1481 = vst [vmem:[%s1471 + $0x48] sm:$0xff] %v1448
  %1482 = vst [vmem:[%s1471 + $0x50] sm:$0xff] %v1449
  %1483 = vst [vmem:[%s1471 + $0x58] sm:$0xff] %v1450
  %1484 = vst [vmem:[%s1471 + $0x60] sm:$0xff] %v1451
  %1485 = vst [vmem:[%s1471 + $0x68] sm:$0xff] %v1452
  %1486 = vst [vmem:[%s1471 + $0x70] sm:$0xff] %v1453
  %1487 = vst [vmem:[%s1471 + $0x78] sm:$0xff] %v1454
  %1488 = vst [vmem:[%s1471 + $0x80] sm:$0xff] %v1455
  %1489 = vst [vmem:[%s1471 + $0x88] sm:$0xff] %v1456
  %1490 = vst [vmem:[%s1471 + $0x90] sm:$0xff] %v1457
  %1491 = vst [vmem:[%s1471 + $0x98] sm:$0xff] %v1458
  %1492 = vst [vmem:[%s1471 + $0xa0] sm:$0xff] %v1459
  %1493 = vst [vmem:[%s1471 + $0xa8] sm:$0xff] %v1460
  %1494 = vst [vmem:[%s1471 + $0xb0] sm:$0xff] %v1461
  %1495 = vst [vmem:[%s1471 + $0xb8] sm:$0xff] %v1462
  %1496 = vst [vmem:[%s1471 + $0xc0] sm:$0xff] %v1463
  %1497 = vst [vmem:[%s1471 + $0xc8] sm:$0xff] %v1464
  %1498 = vst [vmem:[%s1471 + $0xd0] sm:$0xff] %v1465
  %1499 = vst [vmem:[%s1471 + $0xd8] sm:$0xff] %v1466
  %1500 = vst [vmem:[%s1471 + $0xe0] sm:$0xff] %v1467
  %1501 = vst [vmem:[%s1471 + $0xe8] sm:$0xff] %v1468
  %1502 = vst [vmem:[%s1471 + $0xf0] sm:$0xff] %v1469
  %1503 = vst [vmem:[%s1471 + $0xf8] sm:$0xff] %v1470
  // Predicated region
  $region18: #{conv_block_forward.1} parent=0 // pred_check
    _
  $region19: #{conv_block_forward.1} parent=0 // pred_check_branch
    %1505 = sbr.rel (0) target = $region21
  $region20: #{conv_block_forward.1} parent=0 // pred_region
    _
  $region21: #{conv_block_forward.1} parent=0 // pred_fallthru
    _
  // Predicated region
  $region22: #{conv_block_forward.1} parent=0 // pred_check
    _
  $region23: #{conv_block_forward.1} parent=0 // pred_check_branch
    %1507 = sbr.rel (0) target = $region25
  $region24: #{conv_block_forward.1} parent=0 // pred_region
    _
  $region25: #{conv_block_forward.1} parent=0 // pred_fallthru
    _

</llo_original>
